<compile_context>
chip_gen: v5e
topology: v5e:2x2
jax: 0.10.0
libtpu: 0.0.40
codegen_flags: <defaults>
</compile_context>

<pallas_src>
import jax
import jax.numpy as jnp
from jax.experimental import pallas as pl
from jax.experimental.pallas import tpu as pltpu

IN_FEATURES = 1536
H1 = 256
H2 = 64
H2_PAD = 128      # lane-padded fc2 output / fc3 input width
OUT_FEATURES = 2
OUT_PAD = 128     # lane-padded fc3 output width


def _round_up(n, m):
    return ((n + m - 1) // m) * m


def mlp_head_kernel(x_ref, w1_ref, b1_ref, w2_ref, b2_ref, w3_ref, b3_ref, o_ref):
    # fc1 + ReLU: bf16 x bf16 MXU matmul, f32 accumulate.
    x = x_ref[...].astype(jnp.bfloat16)                                   # [TM, 1536]
    h1 = jnp.dot(x, w1_ref[...], preferred_element_type=jnp.float32)     # [TM, 256] f32
    h1 = jnp.maximum(h1 + b1_ref[...], 0.0).astype(jnp.bfloat16)
    # fc2 + ReLU (lane-padded to 128 columns; padded weight/bias columns are 0).
    h2 = jnp.dot(h1, w2_ref[...], preferred_element_type=jnp.float32)    # [TM, 128] f32
    h2 = jnp.maximum(h2 + b2_ref[...], 0.0).astype(jnp.bfloat16)
    # fc3 (no activation), lane-padded to 128 output columns.
    out = jnp.dot(h2, w3_ref[...], preferred_element_type=jnp.float32)   # [TM, 128] f32
    o_ref[...] = (out + b3_ref[...]).astype(o_ref.dtype)


def prepare_params(params):
    """One-time weight prep: transpose to [in, out], cast to bf16, lane-pad the
    64-wide and 2-wide dims to 128 with zeros (padded lanes contribute 0)."""
    w1_t = params["fc1_w"].T.astype(jnp.bfloat16)                         # (1536, 256)
    w2_t = jnp.zeros((H1, H2_PAD), jnp.bfloat16).at[:, :H2].set(
        params["fc2_w"].T.astype(jnp.bfloat16))                           # (256, 128)
    w3_t = jnp.zeros((H2_PAD, OUT_PAD), jnp.bfloat16).at[:H2, :OUT_FEATURES].set(
        params["fc3_w"].T.astype(jnp.bfloat16))                           # (128, 128)
    b1 = params["fc1_b"].astype(jnp.float32)[None, :]                     # (1, 256)
    b2 = jnp.zeros((1, H2_PAD), jnp.float32).at[:, :H2].set(
        params["fc2_b"].astype(jnp.float32)[None, :])                     # (1, 128)
    b3 = jnp.zeros((1, OUT_PAD), jnp.float32).at[:, :OUT_FEATURES].set(
        params["fc3_b"].astype(jnp.float32)[None, :])                     # (1, 128)
    return dict(w1_t=w1_t, b1=b1, w2_t=w2_t, b2=b2, w3_t=w3_t, b3=b3)


def _pick_tm(B):
    """Batch tile: as large as 1024 rows (mem-bound, ~12 MiB double-buffered x),
    but keep >= 2 grid steps when the batch allows so both v7x cores get work."""
    tm = max(8, min(1024, _round_up(B, 8)))
    if B > 8 and tm >= B:
        tm = max(8, _round_up(pl.cdiv(B, 2), 8))
    return tm


def mlp_head_efficientnet_b3(x, prep):
    """x: [B, 1536] float32 or bfloat16.  prep: output of prepare_params."""
    B, F = x.shape
    assert F == IN_FEATURES, F

    TM = _pick_tm(B)
    grid = (pl.cdiv(B, TM),)   # no wrapper-side padding; boundary block is clipped

    w1_t, b1 = prep["w1_t"], prep["b1"]
    w2_t, b2 = prep["w2_t"], prep["b2"]
    w3_t, b3 = prep["w3_t"], prep["b3"]

    x_bytes = x.dtype.itemsize
    weight_bytes = (w1_t.size + w2_t.size + w3_t.size) * 2 \
        + (b1.size + b2.size + b3.size) * 4

    # Advisory cost estimate for the XLA scheduler.
    flops = 2 * B * (IN_FEATURES * H1 + H1 * H2_PAD + H2_PAD * OUT_PAD)
    bytes_accessed = B * IN_FEATURES * x_bytes + weight_bytes + B * OUT_PAD * 2

    # VMEM budget: double-buffered x/out tiles + double-buffered (resident)
    # weights + headroom.  Cap at 48 MiB (safe inside v7x's 64 MiB per core).
    vmem_limit = int(min(
        48 * 1024 * 1024,
        max(16 * 1024 * 1024,
            2 * TM * IN_FEATURES * x_bytes      # x tile, double-buffered
            + 2 * TM * OUT_PAD * 2              # bf16 out tile, double-buffered
            + 2 * weight_bytes                  # default double-buffered weights
            + 4 * 1024 * 1024)))                # headroom for intermediates

    out = pl.pallas_call(
        mlp_head_kernel,
        out_shape=jax.ShapeDtypeStruct((B, OUT_PAD), jnp.bfloat16),
        grid=grid,
        in_specs=[
            pl.BlockSpec((TM, IN_FEATURES), lambda i: (i, 0)),   # x: tiled over batch
            pl.BlockSpec((IN_FEATURES, H1), lambda i: (0, 0)),   # w1: VMEM-resident
            pl.BlockSpec((1, H1), lambda i: (0, 0)),             # b1
            pl.BlockSpec((H1, H2_PAD), lambda i: (0, 0)),        # w2 (lane-padded)
            pl.BlockSpec((1, H2_PAD), lambda i: (0, 0)),         # b2 (lane-padded)
            pl.BlockSpec((H2_PAD, OUT_PAD), lambda i: (0, 0)),   # w3 (lane-padded)
            pl.BlockSpec((1, OUT_PAD), lambda i: (0, 0)),        # b3 (lane-padded)
        ],
        out_specs=pl.BlockSpec((TM, OUT_PAD), lambda i: (i, 0)),
        compiler_params=pltpu.CompilerParams(
            dimension_semantics=("parallel",),
            vmem_limit_bytes=vmem_limit,
        ),
        cost_estimate=pl.CostEstimate(
            flops=flops, transcendentals=0, bytes_accessed=bytes_accessed),
    )(x, w1_t, b1, w2_t, b2, w3_t, b3)

    return out[:B, :OUT_FEATURES].astype(jnp.float32)


def init_params(key):
    """Deterministic synthetic parameters with the module's shapes (PyTorch conv.)."""
    ks = jax.random.split(key, 6)

    def lin(kw, kb, out_f, in_f):
        bound = 1.0 / jnp.sqrt(in_f)
        w = jax.random.uniform(kw, (out_f, in_f), jnp.float32, -bound, bound)
        b = jax.random.uniform(kb, (out_f,), jnp.float32, -bound, bound)
        return w, b

    fc1_w, fc1_b = lin(ks[0], ks[1], H1, IN_FEATURES)   # (256, 1536)
    fc2_w, fc2_b = lin(ks[2], ks[3], H2, H1)            # (64, 256)
    fc3_w, fc3_b = lin(ks[4], ks[5], OUT_FEATURES, H2)  # (2, 64)
    return dict(fc1_w=fc1_w, fc1_b=fc1_b,
                fc2_w=fc2_w, fc2_b=fc2_b,
                fc3_w=fc3_w, fc3_b=fc3_b)


def reference(x, p):
    """Pure-JAX reference applying the same bf16 weight/activation rounding and
    f32 accumulation the kernel uses (module semantics, bf16 precision path)."""
    w1 = p["fc1_w"].astype(jnp.bfloat16)
    w2 = p["fc2_w"].astype(jnp.bfloat16)
    w3 = p["fc3_w"].astype(jnp.bfloat16)
    xb = x.astype(jnp.bfloat16)
    h1 = jnp.maximum(
        jnp.dot(xb, w1.T, preferred_element_type=jnp.float32) + p["fc1_b"], 0.0
    ).astype(jnp.bfloat16)
    h2 = jnp.maximum(
        jnp.dot(h1, w2.T, preferred_element_type=jnp.float32) + p["fc2_b"], 0.0
    ).astype(jnp.bfloat16)
    out = jnp.dot(h2, w3.T, preferred_element_type=jnp.float32) + p["fc3_b"]
    return out.astype(jnp.bfloat16).astype(jnp.float32)


if __name__ == "__main__":
    key = jax.random.PRNGKey(0)
    kx, kx2, kp = jax.random.split(key, 3)

    params = init_params(kp)
    prep = prepare_params(params)
    fwd = jax.jit(mlp_head_efficientnet_b3)

    # Small batch (latency path, single grid step, partial block: B < TM=8... B=4).
    B = 4
    x = jax.random.normal(kx, (B, IN_FEATURES), jnp.float32)
    out = jax.block_until_ready(fwd(x, prep))
    ref = reference(x, params)
    assert out.shape == (B, OUT_FEATURES), out.shape
    assert jnp.allclose(out, ref, atol=2e-3, rtol=2e-3), "mismatch vs reference (B=4)"

    # Larger batch exercising the multi-step grid and the clipped boundary block.
    B2 = 300
    x2 = jax.random.normal(kx2, (B2, IN_FEATURES), jnp.float32)
    out2 = jax.block_until_ready(fwd(x2, prep))
    ref2 = reference(x2, params)
    assert out2.shape == (B2, OUT_FEATURES), out2.shape
    assert jnp.allclose(out2, ref2, atol=2e-3, rtol=2e-3), "mismatch vs reference (B=300)"

    print("KERNEL_OK")
</pallas_src>

<mosaic_0001>
module attributes {stable_mosaic.version = 11 : i64} {
  func.func @mlp_head_kernel(%arg0: i32, %arg1: memref<8x1536xf32, #tpu.memory_space<vmem>>, %arg2: memref<1536x256xbf16, #tpu.memory_space<vmem>>, %arg3: memref<1x256xf32, #tpu.memory_space<vmem>>, %arg4: memref<256x128xbf16, #tpu.memory_space<vmem>>, %arg5: memref<1x128xf32, #tpu.memory_space<vmem>>, %arg6: memref<128x128xbf16, #tpu.memory_space<vmem>>, %arg7: memref<1x128xf32, #tpu.memory_space<vmem>>, %arg8: memref<8x128xbf16, #tpu.memory_space<vmem>>) attributes {dimension_semantics = [#tpu.dimension_semantics<parallel>], iteration_bounds = array<i64: 1>, scalar_prefetch = 0 : i64, scratch_operands = 0 : i64, tpu.core_type = #tpu.core_type<tc>, window_params = [{transform_indices = @transform_0, window_bounds = array<i64: 8, 1536>}, {pipeline_mode = #tpu.pipeline_mode<synchronous>, transform_indices = @transform_1, window_bounds = array<i64: 1536, 256>}, {pipeline_mode = #tpu.pipeline_mode<synchronous>, transform_indices = @transform_2, window_bounds = array<i64: 1, 256>}, {pipeline_mode = #tpu.pipeline_mode<synchronous>, transform_indices = @transform_3, window_bounds = array<i64: 256, 128>}, {pipeline_mode = #tpu.pipeline_mode<synchronous>, transform_indices = @transform_4, window_bounds = array<i64: 1, 128>}, {pipeline_mode = #tpu.pipeline_mode<synchronous>, transform_indices = @transform_5, window_bounds = array<i64: 128, 128>}, {pipeline_mode = #tpu.pipeline_mode<synchronous>, transform_indices = @transform_6, window_bounds = array<i64: 1, 128>}, {transform_indices = @transform_7, window_bounds = array<i64: 8, 128>}]} {
    %c0 = arith.constant 0 : index
    %c0_0 = arith.constant 0 : index
    %0 = vector.load %arg1[%c0, %c0_0] : memref<8x1536xf32, #tpu.memory_space<vmem>>, vector<8x1536xf32>
    %1 = arith.truncf %0 : vector<8x1536xf32> to vector<8x1536xbf16>
    %c0_1 = arith.constant 0 : index
    %c0_2 = arith.constant 0 : index
    %2 = vector.load %arg2[%c0_1, %c0_2] : memref<1536x256xbf16, #tpu.memory_space<vmem>>, vector<1536x256xbf16>
    %cst = arith.constant dense<0.000000e+00> : vector<8x256xf32>
    %3 = tpu.matmul %1, %2, %cst {dimension_numbers = #tpu.dot_dimension_numbers<[1], [0], [0], [1], [0, 0, 1, 1], [], []>} : vector<8x1536xbf16>, vector<1536x256xbf16>, vector<8x256xf32> -> vector<8x256xf32>
    %c0_3 = arith.constant 0 : index
    %c0_4 = arith.constant 0 : index
    %4 = vector.load %arg3[%c0_3, %c0_4] : memref<1x256xf32, #tpu.memory_space<vmem>>, vector<1x256xf32>
    %5 = vector.broadcast %4 : vector<1x256xf32> to vector<8x256xf32>
    %6 = arith.addf %3, %5 : vector<8x256xf32>
    %cst_5 = arith.constant 0.000000e+00 : f32
    %7 = vector.broadcast %cst_5 : f32 to vector<8x256xf32>
    %8 = arith.maximumf %6, %7 : vector<8x256xf32>
    %9 = arith.truncf %8 : vector<8x256xf32> to vector<8x256xbf16>
    %c0_6 = arith.constant 0 : index
    %c0_7 = arith.constant 0 : index
    %10 = vector.load %arg4[%c0_6, %c0_7] : memref<256x128xbf16, #tpu.memory_space<vmem>>, vector<256x128xbf16>
    %cst_8 = arith.constant dense<0.000000e+00> : vector<8x128xf32>
    %11 = tpu.matmul %9, %10, %cst_8 {dimension_numbers = #tpu.dot_dimension_numbers<[1], [0], [0], [1], [0, 0, 1, 1], [], []>} : vector<8x256xbf16>, vector<256x128xbf16>, vector<8x128xf32> -> vector<8x128xf32>
    %c0_9 = arith.constant 0 : index
    %c0_10 = arith.constant 0 : index
    %12 = vector.load %arg5[%c0_9, %c0_10] : memref<1x128xf32, #tpu.memory_space<vmem>>, vector<1x128xf32>
    %13 = vector.broadcast %12 : vector<1x128xf32> to vector<8x128xf32>
    %14 = arith.addf %11, %13 : vector<8x128xf32>
    %cst_11 = arith.constant 0.000000e+00 : f32
    %15 = vector.broadcast %cst_11 : f32 to vector<8x128xf32>
    %16 = arith.maximumf %14, %15 : vector<8x128xf32>
    %17 = arith.truncf %16 : vector<8x128xf32> to vector<8x128xbf16>
    %c0_12 = arith.constant 0 : index
    %c0_13 = arith.constant 0 : index
    %18 = vector.load %arg6[%c0_12, %c0_13] : memref<128x128xbf16, #tpu.memory_space<vmem>>, vector<128x128xbf16>
    %cst_14 = arith.constant dense<0.000000e+00> : vector<8x128xf32>
    %19 = tpu.matmul %17, %18, %cst_14 {dimension_numbers = #tpu.dot_dimension_numbers<[1], [0], [0], [1], [0, 0, 1, 1], [], []>} : vector<8x128xbf16>, vector<128x128xbf16>, vector<8x128xf32> -> vector<8x128xf32>
    %c0_15 = arith.constant 0 : index
    %c0_16 = arith.constant 0 : index
    %20 = vector.load %arg7[%c0_15, %c0_16] : memref<1x128xf32, #tpu.memory_space<vmem>>, vector<1x128xf32>
    %21 = vector.broadcast %20 : vector<1x128xf32> to vector<8x128xf32>
    %22 = arith.addf %19, %21 : vector<8x128xf32>
    %23 = arith.truncf %22 : vector<8x128xf32> to vector<8x128xbf16>
    %c0_17 = arith.constant 0 : index
    %c0_18 = arith.constant 0 : index
    %24 = vector.load %arg8[%c0_17, %c0_18] : memref<8x128xbf16, #tpu.memory_space<vmem>>, vector<8x128xbf16>
    tpu.vector_store %arg8[%c0_17, %c0_18], %23 {strides = array<i32>} : memref<8x128xbf16, #tpu.memory_space<vmem>>, vector<8x128xbf16>,
    return
  }
  func.func @transform_0(%arg0: i32) -> (i32, i32) {
    %c0_i32 = arith.constant 0 : i32
    %c0_i32_0 = arith.constant 0 : i32
    return %arg0, %c0_i32 : i32, i32
  }
  func.func @transform_1(%arg0: i32) -> (i32, i32) {
    %c0_i32 = arith.constant 0 : i32
    %c0_i32_0 = arith.constant 0 : i32
    %c0_i32_1 = arith.constant 0 : i32
    return %c0_i32, %c0_i32_0 : i32, i32
  }
  func.func @transform_2(%arg0: i32) -> (i32, i32) {
    %c0_i32 = arith.constant 0 : i32
    %c0_i32_0 = arith.constant 0 : i32
    %c0_i32_1 = arith.constant 0 : i32
    return %c0_i32, %c0_i32_0 : i32, i32
  }
  func.func @transform_3(%arg0: i32) -> (i32, i32) {
    %c0_i32 = arith.constant 0 : i32
    %c0_i32_0 = arith.constant 0 : i32
    %c0_i32_1 = arith.constant 0 : i32
    return %c0_i32, %c0_i32_0 : i32, i32
  }
  func.func @transform_4(%arg0: i32) -> (i32, i32) {
    %c0_i32 = arith.constant 0 : i32
    %c0_i32_0 = arith.constant 0 : i32
    %c0_i32_1 = arith.constant 0 : i32
    return %c0_i32, %c0_i32_0 : i32, i32
  }
  func.func @transform_5(%arg0: i32) -> (i32, i32) {
    %c0_i32 = arith.constant 0 : i32
    %c0_i32_0 = arith.constant 0 : i32
    %c0_i32_1 = arith.constant 0 : i32
    return %c0_i32, %c0_i32_0 : i32, i32
  }
  func.func @transform_6(%arg0: i32) -> (i32, i32) {
    %c0_i32 = arith.constant 0 : i32
    %c0_i32_0 = arith.constant 0 : i32
    %c0_i32_1 = arith.constant 0 : i32
    return %c0_i32, %c0_i32_0 : i32, i32
  }
  func.func @transform_7(%arg0: i32) -> (i32, i32) {
    %c0_i32 = arith.constant 0 : i32
    %c0_i32_0 = arith.constant 0 : i32
    return %arg0, %c0_i32 : i32, i32
  }
}

</mosaic_0001>

<llo_original>
// kernel: mlp_head_efficientnet_b3.1
$region0: #{mlp_head_efficientnet_b3.1}
  #allocation0 [shape = 'u32[]', space=smem, size = 0x4, offset = 0x4, fixed_abs, tag = 'smem constant byte address 0x4 - core index']
  #allocation1 [shape = 'u32[72,128]{1,0:T(1,128)}', space=vmem, size = 0x9000, scoped, tag = 'internal scratch']
  %s0 = inlined_call_operand.hbm [shape: f32[4,1536], index: 0, kind: input, shape index: {}]
  %s1 = inlined_call_operand.hbm [shape: bf16[1536,256], index: 1, kind: input, shape index: {}]
  %s2 = inlined_call_operand.hbm [shape: f32[1,256], index: 2, kind: input, shape index: {}]
  %s3 = inlined_call_operand.hbm [shape: bf16[256,128], index: 3, kind: input, shape index: {}]
  %s4 = inlined_call_operand.vmem [shape: f32[1,128], index: 4, kind: input, shape index: {}]
  %s5 = inlined_call_operand.hbm [shape: bf16[128,128], index: 5, kind: input, shape index: {}]
  %s6 = inlined_call_operand.vmem [shape: f32[1,128], index: 6, kind: input, shape index: {}]
  %s7 = inlined_call_operand.vmem [shape: bf16[4,128], index: 7, kind: output, shape index: {}]
  %s8 = sld [smem:[#allocation0]]
  $region88: #{mlp_head_efficientnet_b3.1} parent=0
    _
  %s10 = ssub.s32 1, %s8
  %s11 = scalar_select 0, %s10, %s8
  $region1: #{mlp_head_efficientnet_b3.1} parent=0
    #allocation2 [shape = 'u8[49152]{0}', space=vmem, size = 0xc000, scoped, tag = 'input window, operand 0, single buffered']
    #allocation3 [shape = 's32[1]{0}', space=sflag, size = 0x4, scoped, tag = 'scoped memory for mlp_head_efficientnet_b3.1']
    #allocation4 [shape = 'u8[786432]{0}', space=vmem, size = 0xc0000, scoped, tag = 'input window, operand 1, single buffered']
    #allocation5 [shape = 's32[1]{0}', space=sflag, size = 0x4, scoped, tag = 'scoped memory for mlp_head_efficientnet_b3.1']
    #allocation6 [shape = 'u8[1024]{0}', space=vmem, size = 0x400, scoped, tag = 'input window, operand 2, single buffered']
    #allocation7 [shape = 'u8[65536]{0}', space=vmem, size = 0x10000, scoped, tag = 'input window, operand 3, single buffered']
    #allocation8 [shape = 's32[1]{0}', space=sflag, size = 0x4, scoped, tag = 'scoped memory for mlp_head_efficientnet_b3.1']
    #allocation9 [shape = 'u8[32768]{0}', space=vmem, size = 0x8000, scoped, tag = 'input window, operand 5, single buffered']
    #allocation10 [shape = 'u8[2048]{0}', space=vmem, size = 0x800, scoped, tag = 'output window, operand 0, single buffered']
    %12 = vsyncpa [#allocation3], 0
    %13 = vsyncpa [#allocation5], 0
    %14 = vsyncpa [#allocation8], 0
    // Predicated region
    $region2: #{mlp_head_efficientnet_b3.1} parent=1 // pred_check
      _
    $region3: #{mlp_head_efficientnet_b3.1} parent=1 // pred_check_branch
      %16 = sbr.rel (0) target = $region5
    $region4: #{mlp_head_efficientnet_b3.1} parent=1 // pred_region
      %18 = vsyncadd [#allocation3], 768
      %s19 = sshll.u32 %s0, 4
      %s20 = int_to_ptr.hbm [resolvable:$true] %s19
      %s21 = sshll.u32 [#allocation2], 4
      %s22 = int_to_ptr.vmem [resolvable:$true] %s21
      %27 = dma.hbm_to_vmem [thread:$0]  %s20, 768, %s22, [#allocation3], 768, 768, 48
    $region5: #{mlp_head_efficientnet_b3.1} parent=1 // pred_fallthru
      _
    // Predicated region
    $region6: #{mlp_head_efficientnet_b3.1} parent=1 // pred_check
      _
    $region7: #{mlp_head_efficientnet_b3.1} parent=1 // pred_check_branch
      %29 = sbr.rel (0) target = $region9
    $region8: #{mlp_head_efficientnet_b3.1} parent=1 // pred_region
      %31 = vsyncadd [#allocation5], 0
      %s32 = sshll.u32 %s1, 4
      %s33 = int_to_ptr.hbm [resolvable:$true] %s32
      %s34 = sshll.u32 [#allocation4], 4
      %s35 = int_to_ptr.vmem [resolvable:$true] %s34
      %40 = dma.hbm_to_vmem [thread:$0]  %s33, 24576, %s35, [#allocation5], 128, 128, 8
    $region9: #{mlp_head_efficientnet_b3.1} parent=1 // pred_fallthru
      _
    // Predicated region
    $region10: #{mlp_head_efficientnet_b3.1} parent=1 // pred_check
      _
    $region11: #{mlp_head_efficientnet_b3.1} parent=1 // pred_check_branch
      %42 = sbr.rel (0) target = $region13
    $region12: #{mlp_head_efficientnet_b3.1} parent=1 // pred_region
      %44 = vsyncadd [#allocation5], 0
      %s46 = sshll.u32 %s2, 4
      %s47 = int_to_ptr.hbm [resolvable:$true] %s46
      %s48 = sshll.u32 [#allocation6], 4
      %s49 = int_to_ptr.vmem [resolvable:$true] %s48
      %51 = dma.hbm_to_vmem [thread:$0]  %s47, 32, %s49, [#allocation5]
    $region13: #{mlp_head_efficientnet_b3.1} parent=1 // pred_fallthru
      _
    // Predicated region
    $region14: #{mlp_head_efficientnet_b3.1} parent=1 // pred_check
      _
    $region15: #{mlp_head_efficientnet_b3.1} parent=1 // pred_check_branch
      %53 = sbr.rel (0) target = $region17
    $region16: #{mlp_head_efficientnet_b3.1} parent=1 // pred_region
      %55 = vsyncadd [#allocation8], 0
      %s56 = sshll.u32 %s3, 4
      %s57 = int_to_ptr.hbm [resolvable:$true] %s56
      %s58 = sshll.u32 [#allocation7], 4
      %s59 = int_to_ptr.vmem [resolvable:$true] %s58
      %64 = dma.hbm_to_vmem [thread:$0]  %s57, 2048, %s59, [#allocation8], 64, 64, 4
    $region17: #{mlp_head_efficientnet_b3.1} parent=1 // pred_fallthru
      _
    // Predicated region
    $region18: #{mlp_head_efficientnet_b3.1} parent=1 // pred_check
      _
    $region19: #{mlp_head_efficientnet_b3.1} parent=1 // pred_check_branch
      %66 = sbr.rel (0) target = $region21
    $region20: #{mlp_head_efficientnet_b3.1} parent=1 // pred_region
      _
    $region21: #{mlp_head_efficientnet_b3.1} parent=1 // pred_fallthru
      _
    // Predicated region
    $region22: #{mlp_head_efficientnet_b3.1} parent=1 // pred_check
      _
    $region23: #{mlp_head_efficientnet_b3.1} parent=1 // pred_check_branch
      %68 = sbr.rel (0) target = $region25
    $region24: #{mlp_head_efficientnet_b3.1} parent=1 // pred_region
      %70 = vsyncadd [#allocation8], 0
      %s71 = sshll.u32 %s5, 4
      %s72 = int_to_ptr.hbm [resolvable:$true] %s71
      %s73 = sshll.u32 [#allocation9], 4
      %s74 = int_to_ptr.vmem [resolvable:$true] %s73
      %79 = dma.hbm_to_vmem [thread:$0]  %s72, 1024, %s74, [#allocation8], 64, 64, 4
    $region25: #{mlp_head_efficientnet_b3.1} parent=1 // pred_fallthru
      _
    // Predicated region
    $region26: #{mlp_head_efficientnet_b3.1} parent=1 // pred_check
      _
    $region27: #{mlp_head_efficientnet_b3.1} parent=1 // pred_check_branch
      %81 = sbr.rel (0) target = $region29
    $region28: #{mlp_head_efficientnet_b3.1} parent=1 // pred_region
      _
    $region29: #{mlp_head_efficientnet_b3.1} parent=1 // pred_fallthru
      _
    // Predicated region
    $region30: #{mlp_head_efficientnet_b3.1} parent=1 // pred_check
      _
    $region31: #{mlp_head_efficientnet_b3.1} parent=1 // pred_check_branch
      %83 = sbr.rel (0) target = $region33
    $region32: #{mlp_head_efficientnet_b3.1} parent=1 // pred_region
      %85 = dma.done [#allocation3], 1536
    $region33: #{mlp_head_efficientnet_b3.1} parent=1 // pred_fallthru
      _
    // Predicated region
    $region34: #{mlp_head_efficientnet_b3.1} parent=1 // pred_check
      _
    $region35: #{mlp_head_efficientnet_b3.1} parent=1 // pred_check_branch
      %87 = sbr.rel (0) target = $region37
    $region36: #{mlp_head_efficientnet_b3.1} parent=1 // pred_region
      %89 = dma.done [#allocation5], 24576
    $region37: #{mlp_head_efficientnet_b3.1} parent=1 // pred_fallthru
      _
    // Predicated region
    $region38: #{mlp_head_efficientnet_b3.1} parent=1 // pred_check
      _
    $region39: #{mlp_head_efficientnet_b3.1} parent=1 // pred_check_branch
      %91 = sbr.rel (0) target = $region41
    $region40: #{mlp_head_efficientnet_b3.1} parent=1 // pred_region
      %93 = dma.done [#allocation5], 32
    $region41: #{mlp_head_efficientnet_b3.1} parent=1 // pred_fallthru
      _
    // Predicated region
    $region42: #{mlp_head_efficientnet_b3.1} parent=1 // pred_check
      _
    $region43: #{mlp_head_efficientnet_b3.1} parent=1 // pred_check_branch
      %95 = sbr.rel (0) target = $region45
    $region44: #{mlp_head_efficientnet_b3.1} parent=1 // pred_region
      %97 = dma.done [#allocation8], 2048
    $region45: #{mlp_head_efficientnet_b3.1} parent=1 // pred_fallthru
      _
    // Predicated region
    $region46: #{mlp_head_efficientnet_b3.1} parent=1 // pred_check
      _
    $region47: #{mlp_head_efficientnet_b3.1} parent=1 // pred_check_branch
      %99 = sbr.rel (0) target = $region49
    $region48: #{mlp_head_efficientnet_b3.1} parent=1 // pred_region
      %101 = dma.done [#allocation8], 1024
    $region49: #{mlp_head_efficientnet_b3.1} parent=1 // pred_fallthru
      _
    %v102 = vld [vmem:[#allocation2] sm:$0xff]
    %v103 = vld [vmem:[#allocation2 + $0x8] sm:$0xff]
    %v104 = vld [vmem:[#allocation2 + $0x10] sm:$0xff]
    %v105 = vld [vmem:[#allocation2 + $0x18] sm:$0xff]
    %v106 = vld [vmem:[#allocation2 + $0x20] sm:$0xff]
    %v107 = vld [vmem:[#allocation2 + $0x28] sm:$0xff]
    %v108 = vld [vmem:[#allocation2 + $0x30] sm:$0xff]
    %v109 = vld [vmem:[#allocation2 + $0x38] sm:$0xff]
    %v110 = vld [vmem:[#allocation2 + $0x40] sm:$0xff]
    %v111 = vld [vmem:[#allocation2 + $0x48] sm:$0xff]
    %v112 = vld [vmem:[#allocation2 + $0x50] sm:$0xff]
    %v113 = vld [vmem:[#allocation2 + $0x58] sm:$0xff]
    %126 = vst [vmem:[#allocation1] ss:$2 sm:$0xff] %v102
    %s127 = scalar_lea.vmem [#allocation1], 1
    %128 = vst [vmem:[%s127] ss:$2 sm:$0xff] %v108
    %s129 = scalar_lea.vmem [#allocation1], 16
    %130 = vst [vmem:[%s129] ss:$2 sm:$0xff] %v103
    %s131 = scalar_lea.vmem [#allocation1], 17
    %132 = vst [vmem:[%s131] ss:$2 sm:$0xff] %v109
    %s133 = scalar_lea.vmem [#allocation1], 32
    %134 = vst [vmem:[%s133] ss:$2 sm:$0xff] %v104
    %s135 = scalar_lea.vmem [#allocation1], 33
    %136 = vst [vmem:[%s135] ss:$2 sm:$0xff] %v110
    %s137 = scalar_lea.vmem [#allocation1], 48
    %138 = vst [vmem:[%s137] ss:$2 sm:$0xff] %v105
    %s139 = scalar_lea.vmem [#allocation1], 49
    %140 = vst [vmem:[%s139] ss:$2 sm:$0xff] %v111
    %v141 = vld.sshfl [vmem:[#allocation1] sm:$0xff pattern:$0x75316420]
    %v142 = vld.sshfl [vmem:[#allocation1 + $0x8] sm:$0xff pattern:$0x75316420]
    %v143 = vld.sshfl [vmem:[#allocation1 + $0x10] sm:$0xff pattern:$0x75316420]
    %v144 = vld.sshfl [vmem:[#allocation1 + $0x18] sm:$0xff pattern:$0x75316420]
    %v145 = vld.sshfl [vmem:[#allocation1 + $0x20] sm:$0xff pattern:$0x75316420]
    %v146 = vld.sshfl [vmem:[#allocation1 + $0x28] sm:$0xff pattern:$0x75316420]
    %v147 = vld.sshfl [vmem:[#allocation1 + $0x30] sm:$0xff pattern:$0x75316420]
    %v148 = vld.sshfl [vmem:[#allocation1 + $0x38] sm:$0xff pattern:$0x75316420]
    %149 = vst [vmem:[#allocation1] ss:$2 sm:$0xff] %v106
    %150 = vst [vmem:[%s127] ss:$2 sm:$0xff] %v112
    %151 = vst [vmem:[%s129] ss:$2 sm:$0xff] %v107
    %152 = vst [vmem:[%s131] ss:$2 sm:$0xff] %v113
    %v153 = vld.sshfl [vmem:[#allocation1] sm:$0xff pattern:$0x75316420]
    %v154 = vld.sshfl [vmem:[#allocation1 + $0x8] sm:$0xff pattern:$0x75316420]
    %v155 = vld.sshfl [vmem:[#allocation1 + $0x10] sm:$0xff pattern:$0x75316420]
    %v156 = vld.sshfl [vmem:[#allocation1 + $0x18] sm:$0xff pattern:$0x75316420]
    %v169 = vpack.c.bf16 %v141, %v141
    %v170 = vpack.c.bf16 %v142, %v142
    %v171 = vpack.c.bf16 %v143, %v143
    %v172 = vpack.c.bf16 %v144, %v144
    %v173 = vpack.c.bf16 %v145, %v145
    %v174 = vpack.c.bf16 %v146, %v146
    %v175 = vpack.c.bf16 %v147, %v147
    %v176 = vpack.c.bf16 %v148, %v148
    %v177 = vpack.c.bf16 %v153, %v153
    %v178 = vpack.c.bf16 %v154, %v154
    %v179 = vpack.c.bf16 %v155, %v155
    %v180 = vpack.c.bf16 %v156, %v156
    %v181 = vld [vmem:[#allocation4] sm:$0xff]
    %v182 = vld [vmem:[#allocation4 + $0x8] sm:$0xff]
    %v183 = vld [vmem:[#allocation4 + $0x10] sm:$0xff]
    %v184 = vld [vmem:[#allocation4 + $0x18] sm:$0xff]
    %v185 = vld [vmem:[#allocation4 + $0x20] sm:$0xff]
    %v186 = vld [vmem:[#allocation4 + $0x28] sm:$0xff]
    %v187 = vld [vmem:[#allocation4 + $0x30] sm:$0xff]
    %v188 = vld [vmem:[#allocation4 + $0x38] sm:$0xff]
    %v189 = vld [vmem:[#allocation4 + $0x40] sm:$0xff]
    %v190 = vld [vmem:[#allocation4 + $0x48] sm:$0xff]
    %v191 = vld [vmem:[#allocation4 + $0x50] sm:$0xff]
    %v192 = vld [vmem:[#allocation4 + $0x58] sm:$0xff]
    %v193 = vld [vmem:[#allocation4 + $0x60] sm:$0xff]
    %v194 = vld [vmem:[#allocation4 + $0x68] sm:$0xff]
    %v195 = vld [vmem:[#allocation4 + $0x70] sm:$0xff]
    %v196 = vld [vmem:[#allocation4 + $0x78] sm:$0xff]
    %v197 = vld [vmem:[#allocation4 + $0x80] sm:$0xff]
    %v198 = vld [vmem:[#allocation4 + $0x88] sm:$0xff]
    %v199 = vld [vmem:[#allocation4 + $0x90] sm:$0xff]
    %v200 = vld [vmem:[#allocation4 + $0x98] sm:$0xff]
    %v201 = vld [vmem:[#allocation4 + $0xa0] sm:$0xff]
    %v202 = vld [vmem:[#allocation4 + $0xa8] sm:$0xff]
    %v203 = vld [vmem:[#allocation4 + $0xb0] sm:$0xff]
    %v204 = vld [vmem:[#allocation4 + $0xb8] sm:$0xff]
    %v205 = vld [vmem:[#allocation4 + $0xc0] sm:$0xff]
    %v206 = vld [vmem:[#allocation4 + $0xc8] sm:$0xff]
    %v207 = vld [vmem:[#allocation4 + $0xd0] sm:$0xff]
    %v208 = vld [vmem:[#allocation4 + $0xd8] sm:$0xff]
    %v209 = vld [vmem:[#allocation4 + $0xe0] sm:$0xff]
    %v210 = vld [vmem:[#allocation4 + $0xe8] sm:$0xff]
    %v211 = vld [vmem:[#allocation4 + $0xf0] sm:$0xff]
    %v212 = vld [vmem:[#allocation4 + $0xf8] sm:$0xff]
    %v213 = vld [vmem:[#allocation4 + $0x100] sm:$0xff]
    %v214 = vld [vmem:[#allocation4 + $0x108] sm:$0xff]
    %v215 = vld [vmem:[#allocation4 + $0x110] sm:$0xff]
    %v216 = vld [vmem:[#allocation4 + $0x118] sm:$0xff]
    %v217 = vld [vmem:[#allocation4 + $0x120] sm:$0xff]
    %v218 = vld [vmem:[#allocation4 + $0x128] sm:$0xff]
    %v219 = vld [vmem:[#allocation4 + $0x130] sm:$0xff]
    %v220 = vld [vmem:[#allocation4 + $0x138] sm:$0xff]
    %v221 = vld [vmem:[#allocation4 + $0x140] sm:$0xff]
    %v222 = vld [vmem:[#allocation4 + $0x148] sm:$0xff]
    %v223 = vld [vmem:[#allocation4 + $0x150] sm:$0xff]
    %v224 = vld [vmem:[#allocation4 + $0x158] sm:$0xff]
    %v225 = vld [vmem:[#allocation4 + $0x160] sm:$0xff]
    %v226 = vld [vmem:[#allocation4 + $0x168] sm:$0xff]
    %v227 = vld [vmem:[#allocation4 + $0x170] sm:$0xff]
    %v228 = vld [vmem:[#allocation4 + $0x178] sm:$0xff]
    %v229 = vld [vmem:[#allocation4 + $0x180] sm:$0xff]
    %v230 = vld [vmem:[#allocation4 + $0x188] sm:$0xff]
    %v231 = vld [vmem:[#allocation4 + $0x190] sm:$0xff]
    %v232 = vld [vmem:[#allocation4 + $0x198] sm:$0xff]
    %v233 = vld [vmem:[#allocation4 + $0x1a0] sm:$0xff]
    %v234 = vld [vmem:[#allocation4 + $0x1a8] sm:$0xff]
    %v235 = vld [vmem:[#allocation4 + $0x1b0] sm:$0xff]
    %v236 = vld [vmem:[#allocation4 + $0x1b8] sm:$0xff]
    %v237 = vld [vmem:[#allocation4 + $0x1c0] sm:$0xff]
    %v238 = vld [vmem:[#allocation4 + $0x1c8] sm:$0xff]
    %v239 = vld [vmem:[#allocation4 + $0x1d0] sm:$0xff]
    %v240 = vld [vmem:[#allocation4 + $0x1d8] sm:$0xff]
    %v241 = vld [vmem:[#allocation4 + $0x1e0] sm:$0xff]
    %v242 = vld [vmem:[#allocation4 + $0x1e8] sm:$0xff]
    %v243 = vld [vmem:[#allocation4 + $0x1f0] sm:$0xff]
    %v244 = vld [vmem:[#allocation4 + $0x1f8] sm:$0xff]
    %v245 = vld [vmem:[#allocation4 + $0x200] sm:$0xff]
    %v246 = vld [vmem:[#allocation4 + $0x208] sm:$0xff]
    %v247 = vld [vmem:[#allocation4 + $0x210] sm:$0xff]
    %v248 = vld [vmem:[#allocation4 + $0x218] sm:$0xff]
    %v249 = vld [vmem:[#allocation4 + $0x220] sm:$0xff]
    %v250 = vld [vmem:[#allocation4 + $0x228] sm:$0xff]
    %v251 = vld [vmem:[#allocation4 + $0x230] sm:$0xff]
    %v252 = vld [vmem:[#allocation4 + $0x238] sm:$0xff]
    %v253 = vld [vmem:[#allocation4 + $0x240] sm:$0xff]
    %v254 = vld [vmem:[#allocation4 + $0x248] sm:$0xff]
    %v255 = vld [vmem:[#allocation4 + $0x250] sm:$0xff]
    %v256 = vld [vmem:[#allocation4 + $0x258] sm:$0xff]
    %v257 = vld [vmem:[#allocation4 + $0x260] sm:$0xff]
    %v258 = vld [vmem:[#allocation4 + $0x268] sm:$0xff]
    %v259 = vld [vmem:[#allocation4 + $0x270] sm:$0xff]
    %v260 = vld [vmem:[#allocation4 + $0x278] sm:$0xff]
    %v261 = vld [vmem:[#allocation4 + $0x280] sm:$0xff]
    %v262 = vld [vmem:[#allocation4 + $0x288] sm:$0xff]
    %v263 = vld [vmem:[#allocation4 + $0x290] sm:$0xff]
    %v264 = vld [vmem:[#allocation4 + $0x298] sm:$0xff]
    %v265 = vld [vmem:[#allocation4 + $0x2a0] sm:$0xff]
    %v266 = vld [vmem:[#allocation4 + $0x2a8] sm:$0xff]
    %v267 = vld [vmem:[#allocation4 + $0x2b0] sm:$0xff]
    %v268 = vld [vmem:[#allocation4 + $0x2b8] sm:$0xff]
    %v269 = vld [vmem:[#allocation4 + $0x2c0] sm:$0xff]
    %v270 = vld [vmem:[#allocation4 + $0x2c8] sm:$0xff]
    %v271 = vld [vmem:[#allocation4 + $0x2d0] sm:$0xff]
    %v272 = vld [vmem:[#allocation4 + $0x2d8] sm:$0xff]
    %v273 = vld [vmem:[#allocation4 + $0x2e0] sm:$0xff]
    %v274 = vld [vmem:[#allocation4 + $0x2e8] sm:$0xff]
    %v275 = vld [vmem:[#allocation4 + $0x2f0] sm:$0xff]
    %v276 = vld [vmem:[#allocation4 + $0x2f8] sm:$0xff]
    %v277 = vld [vmem:[#allocation4 + $0x300] sm:$0xff]
    %v278 = vld [vmem:[#allocation4 + $0x308] sm:$0xff]
    %v279 = vld [vmem:[#allocation4 + $0x310] sm:$0xff]
    %v280 = vld [vmem:[#allocation4 + $0x318] sm:$0xff]
    %v281 = vld [vmem:[#allocation4 + $0x320] sm:$0xff]
    %v282 = vld [vmem:[#allocation4 + $0x328] sm:$0xff]
    %v283 = vld [vmem:[#allocation4 + $0x330] sm:$0xff]
    %v284 = vld [vmem:[#allocation4 + $0x338] sm:$0xff]
    %v285 = vld [vmem:[#allocation4 + $0x340] sm:$0xff]
    %v286 = vld [vmem:[#allocation4 + $0x348] sm:$0xff]
    %v287 = vld [vmem:[#allocation4 + $0x350] sm:$0xff]
    %v288 = vld [vmem:[#allocation4 + $0x358] sm:$0xff]
    %v289 = vld [vmem:[#allocation4 + $0x360] sm:$0xff]
    %v290 = vld [vmem:[#allocation4 + $0x368] sm:$0xff]
    %v291 = vld [vmem:[#allocation4 + $0x370] sm:$0xff]
    %v292 = vld [vmem:[#allocation4 + $0x378] sm:$0xff]
    %v293 = vld [vmem:[#allocation4 + $0x380] sm:$0xff]
    %v294 = vld [vmem:[#allocation4 + $0x388] sm:$0xff]
    %v295 = vld [vmem:[#allocation4 + $0x390] sm:$0xff]
    %v296 = vld [vmem:[#allocation4 + $0x398] sm:$0xff]
    %v297 = vld [vmem:[#allocation4 + $0x3a0] sm:$0xff]
    %v298 = vld [vmem:[#allocation4 + $0x3a8] sm:$0xff]
    %v299 = vld [vmem:[#allocation4 + $0x3b0] sm:$0xff]
    %v300 = vld [vmem:[#allocation4 + $0x3b8] sm:$0xff]
    %v301 = vld [vmem:[#allocation4 + $0x3c0] sm:$0xff]
    %v302 = vld [vmem:[#allocation4 + $0x3c8] sm:$0xff]
    %v303 = vld [vmem:[#allocation4 + $0x3d0] sm:$0xff]
    %v304 = vld [vmem:[#allocation4 + $0x3d8] sm:$0xff]
    %v305 = vld [vmem:[#allocation4 + $0x3e0] sm:$0xff]
    %v306 = vld [vmem:[#allocation4 + $0x3e8] sm:$0xff]
    %v307 = vld [vmem:[#allocation4 + $0x3f0] sm:$0xff]
    %v308 = vld [vmem:[#allocation4 + $0x3f8] sm:$0xff]
    %v309 = vld [vmem:[#allocation4 + $0x400] sm:$0xff]
    %v310 = vld [vmem:[#allocation4 + $0x408] sm:$0xff]
    %v311 = vld [vmem:[#allocation4 + $0x410] sm:$0xff]
    %v312 = vld [vmem:[#allocation4 + $0x418] sm:$0xff]
    %v313 = vld [vmem:[#allocation4 + $0x420] sm:$0xff]
    %v314 = vld [vmem:[#allocation4 + $0x428] sm:$0xff]
    %v315 = vld [vmem:[#allocation4 + $0x430] sm:$0xff]
    %v316 = vld [vmem:[#allocation4 + $0x438] sm:$0xff]
    %v317 = vld [vmem:[#allocation4 + $0x440] sm:$0xff]
    %v318 = vld [vmem:[#allocation4 + $0x448] sm:$0xff]
    %v319 = vld [vmem:[#allocation4 + $0x450] sm:$0xff]
    %v320 = vld [vmem:[#allocation4 + $0x458] sm:$0xff]
    %v321 = vld [vmem:[#allocation4 + $0x460] sm:$0xff]
    %v322 = vld [vmem:[#allocation4 + $0x468] sm:$0xff]
    %v323 = vld [vmem:[#allocation4 + $0x470] sm:$0xff]
    %v324 = vld [vmem:[#allocation4 + $0x478] sm:$0xff]
    %v325 = vld [vmem:[#allocation4 + $0x480] sm:$0xff]
    %v326 = vld [vmem:[#allocation4 + $0x488] sm:$0xff]
    %v327 = vld [vmem:[#allocation4 + $0x490] sm:$0xff]
    %v328 = vld [vmem:[#allocation4 + $0x498] sm:$0xff]
    %v329 = vld [vmem:[#allocation4 + $0x4a0] sm:$0xff]
    %v330 = vld [vmem:[#allocation4 + $0x4a8] sm:$0xff]
    %v331 = vld [vmem:[#allocation4 + $0x4b0] sm:$0xff]
    %v332 = vld [vmem:[#allocation4 + $0x4b8] sm:$0xff]
    %v333 = vld [vmem:[#allocation4 + $0x4c0] sm:$0xff]
    %v334 = vld [vmem:[#allocation4 + $0x4c8] sm:$0xff]
    %v335 = vld [vmem:[#allocation4 + $0x4d0] sm:$0xff]
    %v336 = vld [vmem:[#allocation4 + $0x4d8] sm:$0xff]
    %v337 = vld [vmem:[#allocation4 + $0x4e0] sm:$0xff]
    %v338 = vld [vmem:[#allocation4 + $0x4e8] sm:$0xff]
    %v339 = vld [vmem:[#allocation4 + $0x4f0] sm:$0xff]
    %v340 = vld [vmem:[#allocation4 + $0x4f8] sm:$0xff]
    %v341 = vld [vmem:[#allocation4 + $0x500] sm:$0xff]
    %v342 = vld [vmem:[#allocation4 + $0x508] sm:$0xff]
    %v343 = vld [vmem:[#allocation4 + $0x510] sm:$0xff]
    %v344 = vld [vmem:[#allocation4 + $0x518] sm:$0xff]
    %v345 = vld [vmem:[#allocation4 + $0x520] sm:$0xff]
    %v346 = vld [vmem:[#allocation4 + $0x528] sm:$0xff]
    %v347 = vld [vmem:[#allocation4 + $0x530] sm:$0xff]
    %v348 = vld [vmem:[#allocation4 + $0x538] sm:$0xff]
    %v349 = vld [vmem:[#allocation4 + $0x540] sm:$0xff]
    %v350 = vld [vmem:[#allocation4 + $0x548] sm:$0xff]
    %v351 = vld [vmem:[#allocation4 + $0x550] sm:$0xff]
    %v352 = vld [vmem:[#allocation4 + $0x558] sm:$0xff]
    %v353 = vld [vmem:[#allocation4 + $0x560] sm:$0xff]
    %v354 = vld [vmem:[#allocation4 + $0x568] sm:$0xff]
    %v355 = vld [vmem:[#allocation4 + $0x570] sm:$0xff]
    %v356 = vld [vmem:[#allocation4 + $0x578] sm:$0xff]
    %v357 = vld [vmem:[#allocation4 + $0x580] sm:$0xff]
    %v358 = vld [vmem:[#allocation4 + $0x588] sm:$0xff]
    %v359 = vld [vmem:[#allocation4 + $0x590] sm:$0xff]
    %v360 = vld [vmem:[#allocation4 + $0x598] sm:$0xff]
    %v361 = vld [vmem:[#allocation4 + $0x5a0] sm:$0xff]
    %v362 = vld [vmem:[#allocation4 + $0x5a8] sm:$0xff]
    %v363 = vld [vmem:[#allocation4 + $0x5b0] sm:$0xff]
    %v364 = vld [vmem:[#allocation4 + $0x5b8] sm:$0xff]
    %v365 = vld [vmem:[#allocation4 + $0x5c0] sm:$0xff]
    %v366 = vld [vmem:[#allocation4 + $0x5c8] sm:$0xff]
    %v367 = vld [vmem:[#allocation4 + $0x5d0] sm:$0xff]
    %v368 = vld [vmem:[#allocation4 + $0x5d8] sm:$0xff]
    %v369 = vld [vmem:[#allocation4 + $0x5e0] sm:$0xff]
    %v370 = vld [vmem:[#allocation4 + $0x5e8] sm:$0xff]
    %v371 = vld [vmem:[#allocation4 + $0x5f0] sm:$0xff]
    %v372 = vld [vmem:[#allocation4 + $0x5f8] sm:$0xff]
    %v373 = vld [vmem:[#allocation6] sm:$0x3]
    %v375 = vperm.slane %v373, 0
    %v376 = vperm.slane %v373, 1
    %v571 = vunpack.c.l.b16 %v181
    %v572 = vunpack.c.h.b16 %v181
    %v573 = vunpack.c.l.b16 %v182
    %v574 = vunpack.c.h.b16 %v182
    %v575 = vunpack.c.l.b16 %v183
    %v576 = vunpack.c.h.b16 %v183
    %v577 = vunpack.c.l.b16 %v184
    %v578 = vunpack.c.h.b16 %v184
    %v579 = vunpack.c.l.b16 %v185
    %v580 = vunpack.c.h.b16 %v185
    %v581 = vunpack.c.l.b16 %v186
    %v582 = vunpack.c.h.b16 %v186
    %v583 = vunpack.c.l.b16 %v187
    %v584 = vunpack.c.h.b16 %v187
    %v585 = vunpack.c.l.b16 %v188
    %v586 = vunpack.c.h.b16 %v188
    %v587 = vunpack.c.l.b16 %v189
    %v588 = vunpack.c.h.b16 %v189
    %v589 = vunpack.c.l.b16 %v190
    %v590 = vunpack.c.h.b16 %v190
    %v591 = vunpack.c.l.b16 %v191
    %v592 = vunpack.c.h.b16 %v191
    %v593 = vunpack.c.l.b16 %v192
    %v594 = vunpack.c.h.b16 %v192
    %v595 = vunpack.c.l.b16 %v193
    %v596 = vunpack.c.h.b16 %v193
    %v597 = vunpack.c.l.b16 %v194
    %v598 = vunpack.c.h.b16 %v194
    %v599 = vunpack.c.l.b16 %v195
    %v600 = vunpack.c.h.b16 %v195
    %v601 = vunpack.c.l.b16 %v196
    %v602 = vunpack.c.h.b16 %v196
    %v603 = vunpack.c.l.b16 %v197
    %v604 = vunpack.c.h.b16 %v197
    %v605 = vunpack.c.l.b16 %v198
    %v606 = vunpack.c.h.b16 %v198
    %v607 = vunpack.c.l.b16 %v199
    %v608 = vunpack.c.h.b16 %v199
    %v609 = vunpack.c.l.b16 %v200
    %v610 = vunpack.c.h.b16 %v200
    %v611 = vunpack.c.l.b16 %v201
    %v612 = vunpack.c.h.b16 %v201
    %v613 = vunpack.c.l.b16 %v202
    %v614 = vunpack.c.h.b16 %v202
    %v615 = vunpack.c.l.b16 %v203
    %v616 = vunpack.c.h.b16 %v203
    %v617 = vunpack.c.l.b16 %v204
    %v618 = vunpack.c.h.b16 %v204
    %v619 = vunpack.c.l.b16 %v205
    %v620 = vunpack.c.h.b16 %v205
    %v621 = vunpack.c.l.b16 %v206
    %v622 = vunpack.c.h.b16 %v206
    %v623 = vunpack.c.l.b16 %v207
    %v624 = vunpack.c.h.b16 %v207
    %v625 = vunpack.c.l.b16 %v208
    %v626 = vunpack.c.h.b16 %v208
    %v627 = vunpack.c.l.b16 %v209
    %v628 = vunpack.c.h.b16 %v209
    %v629 = vunpack.c.l.b16 %v210
    %v630 = vunpack.c.h.b16 %v210
    %v631 = vunpack.c.l.b16 %v211
    %v632 = vunpack.c.h.b16 %v211
    %v633 = vunpack.c.l.b16 %v212
    %v634 = vunpack.c.h.b16 %v212
    %v635 = vunpack.c.l.b16 %v213
    %v636 = vunpack.c.h.b16 %v213
    %v637 = vunpack.c.l.b16 %v214
    %v638 = vunpack.c.h.b16 %v214
    %v639 = vunpack.c.l.b16 %v215
    %v640 = vunpack.c.h.b16 %v215
    %v641 = vunpack.c.l.b16 %v216
    %v642 = vunpack.c.h.b16 %v216
    %v643 = vunpack.c.l.b16 %v217
    %v644 = vunpack.c.h.b16 %v217
    %v645 = vunpack.c.l.b16 %v218
    %v646 = vunpack.c.h.b16 %v218
    %v647 = vunpack.c.l.b16 %v219
    %v648 = vunpack.c.h.b16 %v219
    %v649 = vunpack.c.l.b16 %v220
    %v650 = vunpack.c.h.b16 %v220
    %v651 = vunpack.c.l.b16 %v221
    %v652 = vunpack.c.h.b16 %v221
    %v653 = vunpack.c.l.b16 %v222
    %v654 = vunpack.c.h.b16 %v222
    %v655 = vunpack.c.l.b16 %v223
    %v656 = vunpack.c.h.b16 %v223
    %v657 = vunpack.c.l.b16 %v224
    %v658 = vunpack.c.h.b16 %v224
    %v659 = vunpack.c.l.b16 %v225
    %v660 = vunpack.c.h.b16 %v225
    %v661 = vunpack.c.l.b16 %v226
    %v662 = vunpack.c.h.b16 %v226
    %v663 = vunpack.c.l.b16 %v227
    %v664 = vunpack.c.h.b16 %v227
    %v665 = vunpack.c.l.b16 %v228
    %v666 = vunpack.c.h.b16 %v228
    %v667 = vunpack.c.l.b16 %v229
    %v668 = vunpack.c.h.b16 %v229
    %v669 = vunpack.c.l.b16 %v230
    %v670 = vunpack.c.h.b16 %v230
    %v671 = vunpack.c.l.b16 %v231
    %v672 = vunpack.c.h.b16 %v231
    %v673 = vunpack.c.l.b16 %v232
    %v674 = vunpack.c.h.b16 %v232
    %v675 = vunpack.c.l.b16 %v233
    %v676 = vunpack.c.h.b16 %v233
    %v677 = vunpack.c.l.b16 %v234
    %v678 = vunpack.c.h.b16 %v234
    %v679 = vunpack.c.l.b16 %v235
    %v680 = vunpack.c.h.b16 %v235
    %v681 = vunpack.c.l.b16 %v236
    %v682 = vunpack.c.h.b16 %v236
    %v683 = vunpack.c.l.b16 %v237
    %v684 = vunpack.c.h.b16 %v237
    %v685 = vunpack.c.l.b16 %v238
    %v686 = vunpack.c.h.b16 %v238
    %v687 = vunpack.c.l.b16 %v239
    %v688 = vunpack.c.h.b16 %v239
    %v689 = vunpack.c.l.b16 %v240
    %v690 = vunpack.c.h.b16 %v240
    %v691 = vunpack.c.l.b16 %v241
    %v692 = vunpack.c.h.b16 %v241
    %v693 = vunpack.c.l.b16 %v242
    %v694 = vunpack.c.h.b16 %v242
    %v695 = vunpack.c.l.b16 %v243
    %v696 = vunpack.c.h.b16 %v243
    %v697 = vunpack.c.l.b16 %v244
    %v698 = vunpack.c.h.b16 %v244
    %v699 = vunpack.c.l.b16 %v245
    %v700 = vunpack.c.h.b16 %v245
    %v701 = vunpack.c.l.b16 %v246
    %v702 = vunpack.c.h.b16 %v246
    %v703 = vunpack.c.l.b16 %v247
    %v704 = vunpack.c.h.b16 %v247
    %v705 = vunpack.c.l.b16 %v248
    %v706 = vunpack.c.h.b16 %v248
    %v707 = vunpack.c.l.b16 %v249
    %v708 = vunpack.c.h.b16 %v249
    %v709 = vunpack.c.l.b16 %v250
    %v710 = vunpack.c.h.b16 %v250
    %v711 = vunpack.c.l.b16 %v251
    %v712 = vunpack.c.h.b16 %v251
    %v713 = vunpack.c.l.b16 %v252
    %v714 = vunpack.c.h.b16 %v252
    %v715 = vunpack.c.l.b16 %v253
    %v716 = vunpack.c.h.b16 %v253
    %v717 = vunpack.c.l.b16 %v254
    %v718 = vunpack.c.h.b16 %v254
    %v719 = vunpack.c.l.b16 %v255
    %v720 = vunpack.c.h.b16 %v255
    %v721 = vunpack.c.l.b16 %v256
    %v722 = vunpack.c.h.b16 %v256
    %v723 = vunpack.c.l.b16 %v257
    %v724 = vunpack.c.h.b16 %v257
    %v725 = vunpack.c.l.b16 %v258
    %v726 = vunpack.c.h.b16 %v258
    %v727 = vunpack.c.l.b16 %v259
    %v728 = vunpack.c.h.b16 %v259
    %v729 = vunpack.c.l.b16 %v260
    %v730 = vunpack.c.h.b16 %v260
    %v731 = vunpack.c.l.b16 %v261
    %v732 = vunpack.c.h.b16 %v261
    %v733 = vunpack.c.l.b16 %v262
    %v734 = vunpack.c.h.b16 %v262
    %v735 = vunpack.c.l.b16 %v263
    %v736 = vunpack.c.h.b16 %v263
    %v737 = vunpack.c.l.b16 %v264
    %v738 = vunpack.c.h.b16 %v264
    %v739 = vunpack.c.l.b16 %v265
    %v740 = vunpack.c.h.b16 %v265
    %v741 = vunpack.c.l.b16 %v266
    %v742 = vunpack.c.h.b16 %v266
    %v743 = vunpack.c.l.b16 %v267
    %v744 = vunpack.c.h.b16 %v267
    %v745 = vunpack.c.l.b16 %v268
    %v746 = vunpack.c.h.b16 %v268
    %v747 = vunpack.c.l.b16 %v269
    %v748 = vunpack.c.h.b16 %v269
    %v749 = vunpack.c.l.b16 %v270
    %v750 = vunpack.c.h.b16 %v270
    %v751 = vunpack.c.l.b16 %v271
    %v752 = vunpack.c.h.b16 %v271
    %v753 = vunpack.c.l.b16 %v272
    %v754 = vunpack.c.h.b16 %v272
    %v755 = vunpack.c.l.b16 %v273
    %v756 = vunpack.c.h.b16 %v273
    %v757 = vunpack.c.l.b16 %v274
    %v758 = vunpack.c.h.b16 %v274
    %v759 = vunpack.c.l.b16 %v275
    %v760 = vunpack.c.h.b16 %v275
    %v761 = vunpack.c.l.b16 %v276
    %v762 = vunpack.c.h.b16 %v276
    %v763 = vunpack.c.l.b16 %v277
    %v764 = vunpack.c.h.b16 %v277
    %v765 = vunpack.c.l.b16 %v278
    %v766 = vunpack.c.h.b16 %v278
    %v767 = vunpack.c.l.b16 %v279
    %v768 = vunpack.c.h.b16 %v279
    %v769 = vunpack.c.l.b16 %v280
    %v770 = vunpack.c.h.b16 %v280
    %v771 = vunpack.c.l.b16 %v281
    %v772 = vunpack.c.h.b16 %v281
    %v773 = vunpack.c.l.b16 %v282
    %v774 = vunpack.c.h.b16 %v282
    %v775 = vunpack.c.l.b16 %v283
    %v776 = vunpack.c.h.b16 %v283
    %v777 = vunpack.c.l.b16 %v284
    %v778 = vunpack.c.h.b16 %v284
    %v779 = vunpack.c.l.b16 %v285
    %v780 = vunpack.c.h.b16 %v285
    %v781 = vunpack.c.l.b16 %v286
    %v782 = vunpack.c.h.b16 %v286
    %v783 = vunpack.c.l.b16 %v287
    %v784 = vunpack.c.h.b16 %v287
    %v785 = vunpack.c.l.b16 %v288
    %v786 = vunpack.c.h.b16 %v288
    %v787 = vunpack.c.l.b16 %v289
    %v788 = vunpack.c.h.b16 %v289
    %v789 = vunpack.c.l.b16 %v290
    %v790 = vunpack.c.h.b16 %v290
    %v791 = vunpack.c.l.b16 %v291
    %v792 = vunpack.c.h.b16 %v291
    %v793 = vunpack.c.l.b16 %v292
    %v794 = vunpack.c.h.b16 %v292
    %v795 = vunpack.c.l.b16 %v293
    %v796 = vunpack.c.h.b16 %v293
    %v797 = vunpack.c.l.b16 %v294
    %v798 = vunpack.c.h.b16 %v294
    %v799 = vunpack.c.l.b16 %v295
    %v800 = vunpack.c.h.b16 %v295
    %v801 = vunpack.c.l.b16 %v296
    %v802 = vunpack.c.h.b16 %v296
    %v803 = vunpack.c.l.b16 %v297
    %v804 = vunpack.c.h.b16 %v297
    %v805 = vunpack.c.l.b16 %v298
    %v806 = vunpack.c.h.b16 %v298
    %v807 = vunpack.c.l.b16 %v299
    %v808 = vunpack.c.h.b16 %v299
    %v809 = vunpack.c.l.b16 %v300
    %v810 = vunpack.c.h.b16 %v300
    %v811 = vunpack.c.l.b16 %v301
    %v812 = vunpack.c.h.b16 %v301
    %v813 = vunpack.c.l.b16 %v302
    %v814 = vunpack.c.h.b16 %v302
    %v815 = vunpack.c.l.b16 %v303
    %v816 = vunpack.c.h.b16 %v303
    %v817 = vunpack.c.l.b16 %v304
    %v818 = vunpack.c.h.b16 %v304
    %v819 = vunpack.c.l.b16 %v305
    %v820 = vunpack.c.h.b16 %v305
    %v821 = vunpack.c.l.b16 %v306
    %v822 = vunpack.c.h.b16 %v306
    %v823 = vunpack.c.l.b16 %v307
    %v824 = vunpack.c.h.b16 %v307
    %v825 = vunpack.c.l.b16 %v308
    %v826 = vunpack.c.h.b16 %v308
    %v827 = vunpack.c.l.b16 %v309
    %v828 = vunpack.c.h.b16 %v309
    %v829 = vunpack.c.l.b16 %v310
    %v830 = vunpack.c.h.b16 %v310
    %v831 = vunpack.c.l.b16 %v311
    %v832 = vunpack.c.h.b16 %v311
    %v833 = vunpack.c.l.b16 %v312
    %v834 = vunpack.c.h.b16 %v312
    %v835 = vunpack.c.l.b16 %v313
    %v836 = vunpack.c.h.b16 %v313
    %v837 = vunpack.c.l.b16 %v314
    %v838 = vunpack.c.h.b16 %v314
    %v839 = vunpack.c.l.b16 %v315
    %v840 = vunpack.c.h.b16 %v315
    %v841 = vunpack.c.l.b16 %v316
    %v842 = vunpack.c.h.b16 %v316
    %v843 = vunpack.c.l.b16 %v317
    %v844 = vunpack.c.h.b16 %v317
    %v845 = vunpack.c.l.b16 %v318
    %v846 = vunpack.c.h.b16 %v318
    %v847 = vunpack.c.l.b16 %v319
    %v848 = vunpack.c.h.b16 %v319
    %v849 = vunpack.c.l.b16 %v320
    %v850 = vunpack.c.h.b16 %v320
    %v851 = vunpack.c.l.b16 %v321
    %v852 = vunpack.c.h.b16 %v321
    %v853 = vunpack.c.l.b16 %v322
    %v854 = vunpack.c.h.b16 %v322
    %v855 = vunpack.c.l.b16 %v323
    %v856 = vunpack.c.h.b16 %v323
    %v857 = vunpack.c.l.b16 %v324
    %v858 = vunpack.c.h.b16 %v324
    %v859 = vunpack.c.l.b16 %v325
    %v860 = vunpack.c.h.b16 %v325
    %v861 = vunpack.c.l.b16 %v326
    %v862 = vunpack.c.h.b16 %v326
    %v863 = vunpack.c.l.b16 %v327
    %v864 = vunpack.c.h.b16 %v327
    %v865 = vunpack.c.l.b16 %v328
    %v866 = vunpack.c.h.b16 %v328
    %v867 = vunpack.c.l.b16 %v329
    %v868 = vunpack.c.h.b16 %v329
    %v869 = vunpack.c.l.b16 %v330
    %v870 = vunpack.c.h.b16 %v330
    %v871 = vunpack.c.l.b16 %v331
    %v872 = vunpack.c.h.b16 %v331
    %v873 = vunpack.c.l.b16 %v332
    %v874 = vunpack.c.h.b16 %v332
    %v875 = vunpack.c.l.b16 %v333
    %v876 = vunpack.c.h.b16 %v333
    %v877 = vunpack.c.l.b16 %v334
    %v878 = vunpack.c.h.b16 %v334
    %v879 = vunpack.c.l.b16 %v335
    %v880 = vunpack.c.h.b16 %v335
    %v881 = vunpack.c.l.b16 %v336
    %v882 = vunpack.c.h.b16 %v336
    %v883 = vunpack.c.l.b16 %v337
    %v884 = vunpack.c.h.b16 %v337
    %v885 = vunpack.c.l.b16 %v338
    %v886 = vunpack.c.h.b16 %v338
    %v887 = vunpack.c.l.b16 %v339
    %v888 = vunpack.c.h.b16 %v339
    %v889 = vunpack.c.l.b16 %v340
    %v890 = vunpack.c.h.b16 %v340
    %v891 = vunpack.c.l.b16 %v341
    %v892 = vunpack.c.h.b16 %v341
    %v893 = vunpack.c.l.b16 %v342
    %v894 = vunpack.c.h.b16 %v342
    %v895 = vunpack.c.l.b16 %v343
    %v896 = vunpack.c.h.b16 %v343
    %v897 = vunpack.c.l.b16 %v344
    %v898 = vunpack.c.h.b16 %v344
    %v899 = vunpack.c.l.b16 %v345
    %v900 = vunpack.c.h.b16 %v345
    %v901 = vunpack.c.l.b16 %v346
    %v902 = vunpack.c.h.b16 %v346
    %v903 = vunpack.c.l.b16 %v347
    %v904 = vunpack.c.h.b16 %v347
    %v905 = vunpack.c.l.b16 %v348
    %v906 = vunpack.c.h.b16 %v348
    %v907 = vunpack.c.l.b16 %v349
    %v908 = vunpack.c.h.b16 %v349
    %v909 = vunpack.c.l.b16 %v350
    %v910 = vunpack.c.h.b16 %v350
    %v911 = vunpack.c.l.b16 %v351
    %v912 = vunpack.c.h.b16 %v351
    %v913 = vunpack.c.l.b16 %v352
    %v914 = vunpack.c.h.b16 %v352
    %v915 = vunpack.c.l.b16 %v353
    %v916 = vunpack.c.h.b16 %v353
    %v917 = vunpack.c.l.b16 %v354
    %v918 = vunpack.c.h.b16 %v354
    %v919 = vunpack.c.l.b16 %v355
    %v920 = vunpack.c.h.b16 %v355
    %v921 = vunpack.c.l.b16 %v356
    %v922 = vunpack.c.h.b16 %v356
    %v923 = vunpack.c.l.b16 %v357
    %v924 = vunpack.c.h.b16 %v357
    %v925 = vunpack.c.l.b16 %v358
    %v926 = vunpack.c.h.b16 %v358
    %v927 = vunpack.c.l.b16 %v359
    %v928 = vunpack.c.h.b16 %v359
    %v929 = vunpack.c.l.b16 %v360
    %v930 = vunpack.c.h.b16 %v360
    %v931 = vunpack.c.l.b16 %v361
    %v932 = vunpack.c.h.b16 %v361
    %v933 = vunpack.c.l.b16 %v362
    %v934 = vunpack.c.h.b16 %v362
    %v935 = vunpack.c.l.b16 %v363
    %v936 = vunpack.c.h.b16 %v363
    %v937 = vunpack.c.l.b16 %v364
    %v938 = vunpack.c.h.b16 %v364
    %v939 = vunpack.c.l.b16 %v365
    %v940 = vunpack.c.h.b16 %v365
    %v941 = vunpack.c.l.b16 %v366
    %v942 = vunpack.c.h.b16 %v366
    %v943 = vunpack.c.l.b16 %v367
    %v944 = vunpack.c.h.b16 %v367
    %v945 = vunpack.c.l.b16 %v368
    %v946 = vunpack.c.h.b16 %v368
    %v947 = vunpack.c.l.b16 %v369
    %v948 = vunpack.c.h.b16 %v369
    %v949 = vunpack.c.l.b16 %v370
    %v950 = vunpack.c.h.b16 %v370
    %v951 = vunpack.c.l.b16 %v371
    %v952 = vunpack.c.h.b16 %v371
    %v953 = vunpack.c.l.b16 %v372
    %v954 = vunpack.c.h.b16 %v372
    %v955 = vpack.c.b16 %v573, %v571
    %v956 = vpack.c.b16 %v574, %v572
    %v957 = vpack.c.b16 %v577, %v575
    %v958 = vpack.c.b16 %v578, %v576
    %v959 = vpack.c.b16 %v581, %v579
    %v960 = vpack.c.b16 %v582, %v580
    %v961 = vpack.c.b16 %v585, %v583
    %v962 = vpack.c.b16 %v586, %v584
    %v963 = vpack.c.b16 %v589, %v587
    %v964 = vpack.c.b16 %v590, %v588
    %v965 = vpack.c.b16 %v593, %v591
    %v966 = vpack.c.b16 %v594, %v592
    %v967 = vpack.c.b16 %v597, %v595
    %v968 = vpack.c.b16 %v598, %v596
    %v969 = vpack.c.b16 %v601, %v599
    %v970 = vpack.c.b16 %v602, %v600
    %v971 = vpack.c.b16 %v605, %v603
    %v972 = vpack.c.b16 %v606, %v604
    %v973 = vpack.c.b16 %v609, %v607
    %v974 = vpack.c.b16 %v610, %v608
    %v975 = vpack.c.b16 %v613, %v611
    %v976 = vpack.c.b16 %v614, %v612
    %v977 = vpack.c.b16 %v617, %v615
    %v978 = vpack.c.b16 %v618, %v616
    %v979 = vpack.c.b16 %v621, %v619
    %v980 = vpack.c.b16 %v622, %v620
    %v981 = vpack.c.b16 %v625, %v623
    %v982 = vpack.c.b16 %v626, %v624
    %v983 = vpack.c.b16 %v629, %v627
    %v984 = vpack.c.b16 %v630, %v628
    %v985 = vpack.c.b16 %v633, %v631
    %v986 = vpack.c.b16 %v634, %v632
    %v987 = vpack.c.b16 %v637, %v635
    %v988 = vpack.c.b16 %v638, %v636
    %v989 = vpack.c.b16 %v641, %v639
    %v990 = vpack.c.b16 %v642, %v640
    %v991 = vpack.c.b16 %v645, %v643
    %v992 = vpack.c.b16 %v646, %v644
    %v993 = vpack.c.b16 %v649, %v647
    %v994 = vpack.c.b16 %v650, %v648
    %v995 = vpack.c.b16 %v653, %v651
    %v996 = vpack.c.b16 %v654, %v652
    %v997 = vpack.c.b16 %v657, %v655
    %v998 = vpack.c.b16 %v658, %v656
    %v999 = vpack.c.b16 %v661, %v659
    %v1000 = vpack.c.b16 %v662, %v660
    %v1001 = vpack.c.b16 %v665, %v663
    %v1002 = vpack.c.b16 %v666, %v664
    %v1003 = vpack.c.b16 %v669, %v667
    %v1004 = vpack.c.b16 %v670, %v668
    %v1005 = vpack.c.b16 %v673, %v671
    %v1006 = vpack.c.b16 %v674, %v672
    %v1007 = vpack.c.b16 %v677, %v675
    %v1008 = vpack.c.b16 %v678, %v676
    %v1009 = vpack.c.b16 %v681, %v679
    %v1010 = vpack.c.b16 %v682, %v680
    %v1011 = vpack.c.b16 %v685, %v683
    %v1012 = vpack.c.b16 %v686, %v684
    %v1013 = vpack.c.b16 %v689, %v687
    %v1014 = vpack.c.b16 %v690, %v688
    %v1015 = vpack.c.b16 %v693, %v691
    %v1016 = vpack.c.b16 %v694, %v692
    %v1017 = vpack.c.b16 %v697, %v695
    %v1018 = vpack.c.b16 %v698, %v696
    %v1019 = vpack.c.b16 %v701, %v699
    %v1020 = vpack.c.b16 %v702, %v700
    %v1021 = vpack.c.b16 %v705, %v703
    %v1022 = vpack.c.b16 %v706, %v704
    %v1023 = vpack.c.b16 %v709, %v707
    %v1024 = vpack.c.b16 %v710, %v708
    %v1025 = vpack.c.b16 %v713, %v711
    %v1026 = vpack.c.b16 %v714, %v712
    %v1027 = vpack.c.b16 %v717, %v715
    %v1028 = vpack.c.b16 %v718, %v716
    %v1029 = vpack.c.b16 %v721, %v719
    %v1030 = vpack.c.b16 %v722, %v720
    %v1031 = vpack.c.b16 %v725, %v723
    %v1032 = vpack.c.b16 %v726, %v724
    %v1033 = vpack.c.b16 %v729, %v727
    %v1034 = vpack.c.b16 %v730, %v728
    %v1035 = vpack.c.b16 %v733, %v731
    %v1036 = vpack.c.b16 %v734, %v732
    %v1037 = vpack.c.b16 %v737, %v735
    %v1038 = vpack.c.b16 %v738, %v736
    %v1039 = vpack.c.b16 %v741, %v739
    %v1040 = vpack.c.b16 %v742, %v740
    %v1041 = vpack.c.b16 %v745, %v743
    %v1042 = vpack.c.b16 %v746, %v744
    %v1043 = vpack.c.b16 %v749, %v747
    %v1044 = vpack.c.b16 %v750, %v748
    %v1045 = vpack.c.b16 %v753, %v751
    %v1046 = vpack.c.b16 %v754, %v752
    %v1047 = vpack.c.b16 %v757, %v755
    %v1048 = vpack.c.b16 %v758, %v756
    %v1049 = vpack.c.b16 %v761, %v759
    %v1050 = vpack.c.b16 %v762, %v760
    %v1051 = vpack.c.b16 %v765, %v763
    %v1052 = vpack.c.b16 %v766, %v764
    %v1053 = vpack.c.b16 %v769, %v767
    %v1054 = vpack.c.b16 %v770, %v768
    %v1055 = vpack.c.b16 %v773, %v771
    %v1056 = vpack.c.b16 %v774, %v772
    %v1057 = vpack.c.b16 %v777, %v775
    %v1058 = vpack.c.b16 %v778, %v776
    %v1059 = vpack.c.b16 %v781, %v779
    %v1060 = vpack.c.b16 %v782, %v780
    %v1061 = vpack.c.b16 %v785, %v783
    %v1062 = vpack.c.b16 %v786, %v784
    %v1063 = vpack.c.b16 %v789, %v787
    %v1064 = vpack.c.b16 %v790, %v788
    %v1065 = vpack.c.b16 %v793, %v791
    %v1066 = vpack.c.b16 %v794, %v792
    %v1067 = vpack.c.b16 %v797, %v795
    %v1068 = vpack.c.b16 %v798, %v796
    %v1069 = vpack.c.b16 %v801, %v799
    %v1070 = vpack.c.b16 %v802, %v800
    %v1071 = vpack.c.b16 %v805, %v803
    %v1072 = vpack.c.b16 %v806, %v804
    %v1073 = vpack.c.b16 %v809, %v807
    %v1074 = vpack.c.b16 %v810, %v808
    %v1075 = vpack.c.b16 %v813, %v811
    %v1076 = vpack.c.b16 %v814, %v812
    %v1077 = vpack.c.b16 %v817, %v815
    %v1078 = vpack.c.b16 %v818, %v816
    %v1079 = vpack.c.b16 %v821, %v819
    %v1080 = vpack.c.b16 %v822, %v820
    %v1081 = vpack.c.b16 %v825, %v823
    %v1082 = vpack.c.b16 %v826, %v824
    %v1083 = vpack.c.b16 %v829, %v827
    %v1084 = vpack.c.b16 %v830, %v828
    %v1085 = vpack.c.b16 %v833, %v831
    %v1086 = vpack.c.b16 %v834, %v832
    %v1087 = vpack.c.b16 %v837, %v835
    %v1088 = vpack.c.b16 %v838, %v836
    %v1089 = vpack.c.b16 %v841, %v839
    %v1090 = vpack.c.b16 %v842, %v840
    %v1091 = vpack.c.b16 %v845, %v843
    %v1092 = vpack.c.b16 %v846, %v844
    %v1093 = vpack.c.b16 %v849, %v847
    %v1094 = vpack.c.b16 %v850, %v848
    %v1095 = vpack.c.b16 %v853, %v851
    %v1096 = vpack.c.b16 %v854, %v852
    %v1097 = vpack.c.b16 %v857, %v855
    %v1098 = vpack.c.b16 %v858, %v856
    %v1099 = vpack.c.b16 %v861, %v859
    %v1100 = vpack.c.b16 %v862, %v860
    %v1101 = vpack.c.b16 %v865, %v863
    %v1102 = vpack.c.b16 %v866, %v864
    %v1103 = vpack.c.b16 %v869, %v867
    %v1104 = vpack.c.b16 %v870, %v868
    %v1105 = vpack.c.b16 %v873, %v871
    %v1106 = vpack.c.b16 %v874, %v872
    %v1107 = vpack.c.b16 %v877, %v875
    %v1108 = vpack.c.b16 %v878, %v876
    %v1109 = vpack.c.b16 %v881, %v879
    %v1110 = vpack.c.b16 %v882, %v880
    %v1111 = vpack.c.b16 %v885, %v883
    %v1112 = vpack.c.b16 %v886, %v884
    %v1113 = vpack.c.b16 %v889, %v887
    %v1114 = vpack.c.b16 %v890, %v888
    %v1115 = vpack.c.b16 %v893, %v891
    %v1116 = vpack.c.b16 %v894, %v892
    %v1117 = vpack.c.b16 %v897, %v895
    %v1118 = vpack.c.b16 %v898, %v896
    %v1119 = vpack.c.b16 %v901, %v899
    %v1120 = vpack.c.b16 %v902, %v900
    %v1121 = vpack.c.b16 %v905, %v903
    %v1122 = vpack.c.b16 %v906, %v904
    %v1123 = vpack.c.b16 %v909, %v907
    %v1124 = vpack.c.b16 %v910, %v908
    %v1125 = vpack.c.b16 %v913, %v911
    %v1126 = vpack.c.b16 %v914, %v912
    %v1127 = vpack.c.b16 %v917, %v915
    %v1128 = vpack.c.b16 %v918, %v916
    %v1129 = vpack.c.b16 %v921, %v919
    %v1130 = vpack.c.b16 %v922, %v920
    %v1131 = vpack.c.b16 %v925, %v923
    %v1132 = vpack.c.b16 %v926, %v924
    %v1133 = vpack.c.b16 %v929, %v927
    %v1134 = vpack.c.b16 %v930, %v928
    %v1135 = vpack.c.b16 %v933, %v931
    %v1136 = vpack.c.b16 %v934, %v932
    %v1137 = vpack.c.b16 %v937, %v935
    %v1138 = vpack.c.b16 %v938, %v936
    %v1139 = vpack.c.b16 %v941, %v939
    %v1140 = vpack.c.b16 %v942, %v940
    %v1141 = vpack.c.b16 %v945, %v943
    %v1142 = vpack.c.b16 %v946, %v944
    %v1143 = vpack.c.b16 %v949, %v947
    %v1144 = vpack.c.b16 %v950, %v948
    %v1145 = vpack.c.b16 %v953, %v951
    %v1146 = vpack.c.b16 %v954, %v952
    %1339 = vmatpush.bf16.msra.mxu0 %v969
    %1340 = vmatpush.bf16.msra.mxu0 %v967
    %1341 = vmatpush.bf16.msra.mxu0 %v965
    %1342 = vmatpush.bf16.msra.mxu0 %v963
    %1343 = vmatpush.bf16.msra.mxu0 %v961
    %1344 = vmatpush.bf16.msra.mxu0 %v959
    %1345 = vmatpush.bf16.msra.mxu0 %v957
    %1346 = vmatpush.bf16.msra.mxu0 %v955
    %1347 = vmatmul.bf16.gmra.mxu0 %v169
    %v1348 = vpop.f32.mrf.mxu0
    %v1349 = vadd.f32 %v375, %v1348
    %v1350 = vpop.f32.mrf.mxu0
    %1351 = vdwg.mxu0
    %1352 = vmatpush.bf16.msra.mxu0 %v985
    %1353 = vmatpush.bf16.msra.mxu0 %v983
    %1354 = vmatpush.bf16.msra.mxu0 %v981
    %1355 = vmatpush.bf16.msra.mxu0 %v979
    %1356 = vmatpush.bf16.msra.mxu0 %v977
    %1357 = vmatpush.bf16.msra.mxu0 %v975
    %1358 = vmatpush.bf16.msra.mxu0 %v973
    %1359 = vmatpush.bf16.msra.mxu0 %v971
    %1360 = vmatmul.bf16.gmra.mxu0 %v170
    %v1361 = vpop.f32.mrf.mxu0
    %v1362 = vadd.f32 %v1349, %v1361
    %v1363 = vpop.f32.mrf.mxu0
    %1364 = vdwg.mxu0
    %1365 = vmatpush.bf16.msra.mxu0 %v1001
    %1366 = vmatpush.bf16.msra.mxu0 %v999
    %1367 = vmatpush.bf16.msra.mxu0 %v997
    %1368 = vmatpush.bf16.msra.mxu0 %v995
    %1369 = vmatpush.bf16.msra.mxu0 %v993
    %1370 = vmatpush.bf16.msra.mxu0 %v991
    %1371 = vmatpush.bf16.msra.mxu0 %v989
    %1372 = vmatpush.bf16.msra.mxu0 %v987
    %1373 = vmatmul.bf16.gmra.mxu0 %v171
    %v1374 = vpop.f32.mrf.mxu0
    %v1375 = vadd.f32 %v1362, %v1374
    %v1376 = vpop.f32.mrf.mxu0
    %1377 = vdwg.mxu0
    %1378 = vmatpush.bf16.msra.mxu0 %v1017
    %1379 = vmatpush.bf16.msra.mxu0 %v1015
    %1380 = vmatpush.bf16.msra.mxu0 %v1013
    %1381 = vmatpush.bf16.msra.mxu0 %v1011
    %1382 = vmatpush.bf16.msra.mxu0 %v1009
    %1383 = vmatpush.bf16.msra.mxu0 %v1007
    %1384 = vmatpush.bf16.msra.mxu0 %v1005
    %1385 = vmatpush.bf16.msra.mxu0 %v1003
    %1386 = vmatmul.bf16.gmra.mxu0 %v172
    %v1387 = vpop.f32.mrf.mxu0
    %v1388 = vadd.f32 %v1375, %v1387
    %v1389 = vpop.f32.mrf.mxu0
    %1390 = vdwg.mxu0
    %1391 = vmatpush.bf16.msra.mxu0 %v1033
    %1392 = vmatpush.bf16.msra.mxu0 %v1031
    %1393 = vmatpush.bf16.msra.mxu0 %v1029
    %1394 = vmatpush.bf16.msra.mxu0 %v1027
    %1395 = vmatpush.bf16.msra.mxu0 %v1025
    %1396 = vmatpush.bf16.msra.mxu0 %v1023
    %1397 = vmatpush.bf16.msra.mxu0 %v1021
    %1398 = vmatpush.bf16.msra.mxu0 %v1019
    %1399 = vmatmul.bf16.gmra.mxu0 %v173
    %v1400 = vpop.f32.mrf.mxu0
    %v1401 = vadd.f32 %v1388, %v1400
    %v1402 = vpop.f32.mrf.mxu0
    %1403 = vdwg.mxu0
    %1404 = vmatpush.bf16.msra.mxu0 %v1049
    %1405 = vmatpush.bf16.msra.mxu0 %v1047
    %1406 = vmatpush.bf16.msra.mxu0 %v1045
    %1407 = vmatpush.bf16.msra.mxu0 %v1043
    %1408 = vmatpush.bf16.msra.mxu0 %v1041
    %1409 = vmatpush.bf16.msra.mxu0 %v1039
    %1410 = vmatpush.bf16.msra.mxu0 %v1037
    %1411 = vmatpush.bf16.msra.mxu0 %v1035
    %1412 = vmatmul.bf16.gmra.mxu0 %v174
    %v1413 = vpop.f32.mrf.mxu0
    %v1414 = vadd.f32 %v1401, %v1413
    %v1415 = vpop.f32.mrf.mxu0
    %1416 = vdwg.mxu0
    %1417 = vmatpush.bf16.msra.mxu0 %v1065
    %1418 = vmatpush.bf16.msra.mxu0 %v1063
    %1419 = vmatpush.bf16.msra.mxu0 %v1061
    %1420 = vmatpush.bf16.msra.mxu0 %v1059
    %1421 = vmatpush.bf16.msra.mxu0 %v1057
    %1422 = vmatpush.bf16.msra.mxu0 %v1055
    %1423 = vmatpush.bf16.msra.mxu0 %v1053
    %1424 = vmatpush.bf16.msra.mxu0 %v1051
    %1425 = vmatmul.bf16.gmra.mxu0 %v175
    %v1426 = vpop.f32.mrf.mxu0
    %v1427 = vadd.f32 %v1414, %v1426
    %v1428 = vpop.f32.mrf.mxu0
    %1429 = vdwg.mxu0
    %1430 = vmatpush.bf16.msra.mxu0 %v1081
    %1431 = vmatpush.bf16.msra.mxu0 %v1079
    %1432 = vmatpush.bf16.msra.mxu0 %v1077
    %1433 = vmatpush.bf16.msra.mxu0 %v1075
    %1434 = vmatpush.bf16.msra.mxu0 %v1073
    %1435 = vmatpush.bf16.msra.mxu0 %v1071
    %1436 = vmatpush.bf16.msra.mxu0 %v1069
    %1437 = vmatpush.bf16.msra.mxu0 %v1067
    %1438 = vmatmul.bf16.gmra.mxu0 %v176
    %v1439 = vpop.f32.mrf.mxu0
    %v1440 = vadd.f32 %v1427, %v1439
    %v1441 = vpop.f32.mrf.mxu0
    %1442 = vdwg.mxu0
    %1443 = vmatpush.bf16.msra.mxu0 %v1097
    %1444 = vmatpush.bf16.msra.mxu0 %v1095
    %1445 = vmatpush.bf16.msra.mxu0 %v1093
    %1446 = vmatpush.bf16.msra.mxu0 %v1091
    %1447 = vmatpush.bf16.msra.mxu0 %v1089
    %1448 = vmatpush.bf16.msra.mxu0 %v1087
    %1449 = vmatpush.bf16.msra.mxu0 %v1085
    %1450 = vmatpush.bf16.msra.mxu0 %v1083
    %1451 = vmatmul.bf16.gmra.mxu0 %v177
    %v1452 = vpop.f32.mrf.mxu0
    %v1453 = vadd.f32 %v1440, %v1452
    %v1454 = vpop.f32.mrf.mxu0
    %1455 = vdwg.mxu0
    %1456 = vmatpush.bf16.msra.mxu0 %v1113
    %1457 = vmatpush.bf16.msra.mxu0 %v1111
    %1458 = vmatpush.bf16.msra.mxu0 %v1109
    %1459 = vmatpush.bf16.msra.mxu0 %v1107
    %1460 = vmatpush.bf16.msra.mxu0 %v1105
    %1461 = vmatpush.bf16.msra.mxu0 %v1103
    %1462 = vmatpush.bf16.msra.mxu0 %v1101
    %1463 = vmatpush.bf16.msra.mxu0 %v1099
    %1464 = vmatmul.bf16.gmra.mxu0 %v178
    %v1465 = vpop.f32.mrf.mxu0
    %v1466 = vadd.f32 %v1453, %v1465
    %v1467 = vpop.f32.mrf.mxu0
    %1468 = vdwg.mxu0
    %1469 = vmatpush.bf16.msra.mxu0 %v1129
    %1470 = vmatpush.bf16.msra.mxu0 %v1127
    %1471 = vmatpush.bf16.msra.mxu0 %v1125
    %1472 = vmatpush.bf16.msra.mxu0 %v1123
    %1473 = vmatpush.bf16.msra.mxu0 %v1121
    %1474 = vmatpush.bf16.msra.mxu0 %v1119
    %1475 = vmatpush.bf16.msra.mxu0 %v1117
    %1476 = vmatpush.bf16.msra.mxu0 %v1115
    %1477 = vmatmul.bf16.gmra.mxu0 %v179
    %v1478 = vpop.f32.mrf.mxu0
    %v1479 = vadd.f32 %v1466, %v1478
    %v1480 = vpop.f32.mrf.mxu0
    %1481 = vdwg.mxu0
    %1482 = vmatpush.bf16.msra.mxu0 %v1145
    %1483 = vmatpush.bf16.msra.mxu0 %v1143
    %1484 = vmatpush.bf16.msra.mxu0 %v1141
    %1485 = vmatpush.bf16.msra.mxu0 %v1139
    %1486 = vmatpush.bf16.msra.mxu0 %v1137
    %1487 = vmatpush.bf16.msra.mxu0 %v1135
    %1488 = vmatpush.bf16.msra.mxu0 %v1133
    %1489 = vmatpush.bf16.msra.mxu0 %v1131
    %1490 = vmatmul.bf16.gmra.mxu0 %v180
    %v1491 = vpop.f32.mrf.mxu0
    %v1492 = vadd.f32 %v1479, %v1491
    %v1493 = vpop.f32.mrf.mxu0
    %1494 = vdwg.mxu0
    %1495 = vmatpush.bf16.msra.mxu0 %v970
    %1496 = vmatpush.bf16.msra.mxu0 %v968
    %1497 = vmatpush.bf16.msra.mxu0 %v966
    %1498 = vmatpush.bf16.msra.mxu0 %v964
    %1499 = vmatpush.bf16.msra.mxu0 %v962
    %1500 = vmatpush.bf16.msra.mxu0 %v960
    %1501 = vmatpush.bf16.msra.mxu0 %v958
    %1502 = vmatpush.bf16.msra.mxu0 %v956
    %1503 = vmatmul.bf16.gmra.mxu0 %v169
    %v1504 = vpop.f32.mrf.mxu0
    %v1505 = vadd.f32 %v376, %v1504
    %v1506 = vpop.f32.mrf.mxu0
    %1507 = vdwg.mxu0
    %1508 = vmatpush.bf16.msra.mxu0 %v986
    %1509 = vmatpush.bf16.msra.mxu0 %v984
    %1510 = vmatpush.bf16.msra.mxu0 %v982
    %1511 = vmatpush.bf16.msra.mxu0 %v980
    %1512 = vmatpush.bf16.msra.mxu0 %v978
    %1513 = vmatpush.bf16.msra.mxu0 %v976
    %1514 = vmatpush.bf16.msra.mxu0 %v974
    %1515 = vmatpush.bf16.msra.mxu0 %v972
    %1516 = vmatmul.bf16.gmra.mxu0 %v170
    %v1517 = vpop.f32.mrf.mxu0
    %v1518 = vadd.f32 %v1505, %v1517
    %v1519 = vpop.f32.mrf.mxu0
    %1520 = vdwg.mxu0
    %1521 = vmatpush.bf16.msra.mxu0 %v1002
    %1522 = vmatpush.bf16.msra.mxu0 %v1000
    %1523 = vmatpush.bf16.msra.mxu0 %v998
    %1524 = vmatpush.bf16.msra.mxu0 %v996
    %1525 = vmatpush.bf16.msra.mxu0 %v994
    %1526 = vmatpush.bf16.msra.mxu0 %v992
    %1527 = vmatpush.bf16.msra.mxu0 %v990
    %1528 = vmatpush.bf16.msra.mxu0 %v988
    %1529 = vmatmul.bf16.gmra.mxu0 %v171
    %v1530 = vpop.f32.mrf.mxu0
    %v1531 = vadd.f32 %v1518, %v1530
    %v1532 = vpop.f32.mrf.mxu0
    %1533 = vdwg.mxu0
    %1534 = vmatpush.bf16.msra.mxu0 %v1018
    %1535 = vmatpush.bf16.msra.mxu0 %v1016
    %1536 = vmatpush.bf16.msra.mxu0 %v1014
    %1537 = vmatpush.bf16.msra.mxu0 %v1012
    %1538 = vmatpush.bf16.msra.mxu0 %v1010
    %1539 = vmatpush.bf16.msra.mxu0 %v1008
    %1540 = vmatpush.bf16.msra.mxu0 %v1006
    %1541 = vmatpush.bf16.msra.mxu0 %v1004
    %1542 = vmatmul.bf16.gmra.mxu0 %v172
    %v1543 = vpop.f32.mrf.mxu0
    %v1544 = vadd.f32 %v1531, %v1543
    %v1545 = vpop.f32.mrf.mxu0
    %1546 = vdwg.mxu0
    %1547 = vmatpush.bf16.msra.mxu0 %v1034
    %1548 = vmatpush.bf16.msra.mxu0 %v1032
    %1549 = vmatpush.bf16.msra.mxu0 %v1030
    %1550 = vmatpush.bf16.msra.mxu0 %v1028
    %1551 = vmatpush.bf16.msra.mxu0 %v1026
    %1552 = vmatpush.bf16.msra.mxu0 %v1024
    %1553 = vmatpush.bf16.msra.mxu0 %v1022
    %1554 = vmatpush.bf16.msra.mxu0 %v1020
    %1555 = vmatmul.bf16.gmra.mxu0 %v173
    %v1556 = vpop.f32.mrf.mxu0
    %v1557 = vadd.f32 %v1544, %v1556
    %v1558 = vpop.f32.mrf.mxu0
    %1559 = vdwg.mxu0
    %1560 = vmatpush.bf16.msra.mxu0 %v1050
    %1561 = vmatpush.bf16.msra.mxu0 %v1048
    %1562 = vmatpush.bf16.msra.mxu0 %v1046
    %1563 = vmatpush.bf16.msra.mxu0 %v1044
    %1564 = vmatpush.bf16.msra.mxu0 %v1042
    %1565 = vmatpush.bf16.msra.mxu0 %v1040
    %1566 = vmatpush.bf16.msra.mxu0 %v1038
    %1567 = vmatpush.bf16.msra.mxu0 %v1036
    %1568 = vmatmul.bf16.gmra.mxu0 %v174
    %v1569 = vpop.f32.mrf.mxu0
    %v1570 = vadd.f32 %v1557, %v1569
    %v1571 = vpop.f32.mrf.mxu0
    %1572 = vdwg.mxu0
    %1573 = vmatpush.bf16.msra.mxu0 %v1066
    %1574 = vmatpush.bf16.msra.mxu0 %v1064
    %1575 = vmatpush.bf16.msra.mxu0 %v1062
    %1576 = vmatpush.bf16.msra.mxu0 %v1060
    %1577 = vmatpush.bf16.msra.mxu0 %v1058
    %1578 = vmatpush.bf16.msra.mxu0 %v1056
    %1579 = vmatpush.bf16.msra.mxu0 %v1054
    %1580 = vmatpush.bf16.msra.mxu0 %v1052
    %1581 = vmatmul.bf16.gmra.mxu0 %v175
    %v1582 = vpop.f32.mrf.mxu0
    %v1583 = vadd.f32 %v1570, %v1582
    %v1584 = vpop.f32.mrf.mxu0
    %1585 = vdwg.mxu0
    %1586 = vmatpush.bf16.msra.mxu0 %v1082
    %1587 = vmatpush.bf16.msra.mxu0 %v1080
    %1588 = vmatpush.bf16.msra.mxu0 %v1078
    %1589 = vmatpush.bf16.msra.mxu0 %v1076
    %1590 = vmatpush.bf16.msra.mxu0 %v1074
    %1591 = vmatpush.bf16.msra.mxu0 %v1072
    %1592 = vmatpush.bf16.msra.mxu0 %v1070
    %1593 = vmatpush.bf16.msra.mxu0 %v1068
    %1594 = vmatmul.bf16.gmra.mxu0 %v176
    %v1595 = vpop.f32.mrf.mxu0
    %v1596 = vadd.f32 %v1583, %v1595
    %v1597 = vpop.f32.mrf.mxu0
    %1598 = vdwg.mxu0
    %1599 = vmatpush.bf16.msra.mxu0 %v1098
    %1600 = vmatpush.bf16.msra.mxu0 %v1096
    %1601 = vmatpush.bf16.msra.mxu0 %v1094
    %1602 = vmatpush.bf16.msra.mxu0 %v1092
    %1603 = vmatpush.bf16.msra.mxu0 %v1090
    %1604 = vmatpush.bf16.msra.mxu0 %v1088
    %1605 = vmatpush.bf16.msra.mxu0 %v1086
    %1606 = vmatpush.bf16.msra.mxu0 %v1084
    %1607 = vmatmul.bf16.gmra.mxu0 %v177
    %v1608 = vpop.f32.mrf.mxu0
    %v1609 = vadd.f32 %v1596, %v1608
    %v1610 = vpop.f32.mrf.mxu0
    %1611 = vdwg.mxu0
    %1612 = vmatpush.bf16.msra.mxu0 %v1114
    %1613 = vmatpush.bf16.msra.mxu0 %v1112
    %1614 = vmatpush.bf16.msra.mxu0 %v1110
    %1615 = vmatpush.bf16.msra.mxu0 %v1108
    %1616 = vmatpush.bf16.msra.mxu0 %v1106
    %1617 = vmatpush.bf16.msra.mxu0 %v1104
    %1618 = vmatpush.bf16.msra.mxu0 %v1102
    %1619 = vmatpush.bf16.msra.mxu0 %v1100
    %1620 = vmatmul.bf16.gmra.mxu0 %v178
    %v1621 = vpop.f32.mrf.mxu0
    %v1622 = vadd.f32 %v1609, %v1621
    %v1623 = vpop.f32.mrf.mxu0
    %1624 = vdwg.mxu0
    %1625 = vmatpush.bf16.msra.mxu0 %v1130
    %1626 = vmatpush.bf16.msra.mxu0 %v1128
    %1627 = vmatpush.bf16.msra.mxu0 %v1126
    %1628 = vmatpush.bf16.msra.mxu0 %v1124
    %1629 = vmatpush.bf16.msra.mxu0 %v1122
    %1630 = vmatpush.bf16.msra.mxu0 %v1120
    %1631 = vmatpush.bf16.msra.mxu0 %v1118
    %1632 = vmatpush.bf16.msra.mxu0 %v1116
    %1633 = vmatmul.bf16.gmra.mxu0 %v179
    %v1634 = vpop.f32.mrf.mxu0
    %v1635 = vadd.f32 %v1622, %v1634
    %v1636 = vpop.f32.mrf.mxu0
    %1637 = vdwg.mxu0
    %1638 = vmatpush.bf16.msra.mxu0 %v1146
    %1639 = vmatpush.bf16.msra.mxu0 %v1144
    %1640 = vmatpush.bf16.msra.mxu0 %v1142
    %1641 = vmatpush.bf16.msra.mxu0 %v1140
    %1642 = vmatpush.bf16.msra.mxu0 %v1138
    %1643 = vmatpush.bf16.msra.mxu0 %v1136
    %1644 = vmatpush.bf16.msra.mxu0 %v1134
    %1645 = vmatpush.bf16.msra.mxu0 %v1132
    %1646 = vmatmul.bf16.gmra.mxu0 %v180
    %v1647 = vpop.f32.mrf.mxu0
    %v1648 = vadd.f32 %v1635, %v1647
    %v1649 = vpop.f32.mrf.mxu0
    %1650 = vdwg.mxu0
    %v1651 = vmax.f32 %v1492, 0.0
    %v1652 = vmax.f32 %v1648, 0.0
    %v1653 = vpack.c.bf16 %v1651, %v1651
    %v1654 = vpack.c.bf16 %v1652, %v1652
    %v1655 = vld [vmem:[#allocation7] sm:$0xf]
    %v1656 = vld [vmem:[#allocation7 + $0x4] sm:$0xf]
    %v1657 = vld [vmem:[#allocation7 + $0x8] sm:$0xf]
    %v1658 = vld [vmem:[#allocation7 + $0xc] sm:$0xf]
    %v1659 = vld [vmem:[#allocation7 + $0x10] sm:$0xf]
    %v1660 = vld [vmem:[#allocation7 + $0x14] sm:$0xf]
    %v1661 = vld [vmem:[#allocation7 + $0x18] sm:$0xf]
    %v1662 = vld [vmem:[#allocation7 + $0x1c] sm:$0xf]
    %v1663 = vld [vmem:[#allocation7 + $0x20] sm:$0xf]
    %v1664 = vld [vmem:[#allocation7 + $0x24] sm:$0xf]
    %v1665 = vld [vmem:[#allocation7 + $0x28] sm:$0xf]
    %v1666 = vld [vmem:[#allocation7 + $0x2c] sm:$0xf]
    %v1667 = vld [vmem:[#allocation7 + $0x30] sm:$0xf]
    %v1668 = vld [vmem:[#allocation7 + $0x34] sm:$0xf]
    %v1669 = vld [vmem:[#allocation7 + $0x38] sm:$0xf]
    %v1670 = vld [vmem:[#allocation7 + $0x3c] sm:$0xf]
    %v1671 = vld [vmem:[#allocation7 + $0x40] sm:$0xf]
    %v1672 = vld [vmem:[#allocation7 + $0x44] sm:$0xf]
    %v1673 = vld [vmem:[#allocation7 + $0x48] sm:$0xf]
    %v1674 = vld [vmem:[#allocation7 + $0x4c] sm:$0xf]
    %v1675 = vld [vmem:[#allocation7 + $0x50] sm:$0xf]
    %v1676 = vld [vmem:[#allocation7 + $0x54] sm:$0xf]
    %v1677 = vld [vmem:[#allocation7 + $0x58] sm:$0xf]
    %v1678 = vld [vmem:[#allocation7 + $0x5c] sm:$0xf]
    %v1679 = vld [vmem:[#allocation7 + $0x60] sm:$0xf]
    %v1680 = vld [vmem:[#allocation7 + $0x64] sm:$0xf]
    %v1681 = vld [vmem:[#allocation7 + $0x68] sm:$0xf]
    %v1682 = vld [vmem:[#allocation7 + $0x6c] sm:$0xf]
    %v1683 = vld [vmem:[#allocation7 + $0x70] sm:$0xf]
    %v1684 = vld [vmem:[#allocation7 + $0x74] sm:$0xf]
    %v1685 = vld [vmem:[#allocation7 + $0x78] sm:$0xf]
    %v1686 = vld [vmem:[#allocation7 + $0x7c] sm:$0xf]
    %v1687 = vld [vmem:[%s4] sm:$0x1]
    %v1689 = vperm.slane %v1687, 0
    %v1723 = vunpack.c.l.b16 %v1655
    %v1724 = vunpack.c.l.b16 %v1656
    %v1725 = vunpack.c.l.b16 %v1657
    %v1726 = vunpack.c.l.b16 %v1658
    %v1727 = vunpack.c.l.b16 %v1659
    %v1728 = vunpack.c.l.b16 %v1660
    %v1729 = vunpack.c.l.b16 %v1661
    %v1730 = vunpack.c.l.b16 %v1662
    %v1731 = vunpack.c.l.b16 %v1663
    %v1732 = vunpack.c.l.b16 %v1664
    %v1733 = vunpack.c.l.b16 %v1665
    %v1734 = vunpack.c.l.b16 %v1666
    %v1735 = vunpack.c.l.b16 %v1667
    %v1736 = vunpack.c.l.b16 %v1668
    %v1737 = vunpack.c.l.b16 %v1669
    %v1738 = vunpack.c.l.b16 %v1670
    %v1739 = vunpack.c.l.b16 %v1671
    %v1740 = vunpack.c.l.b16 %v1672
    %v1741 = vunpack.c.l.b16 %v1673
    %v1742 = vunpack.c.l.b16 %v1674
    %v1743 = vunpack.c.l.b16 %v1675
    %v1744 = vunpack.c.l.b16 %v1676
    %v1745 = vunpack.c.l.b16 %v1677
    %v1746 = vunpack.c.l.b16 %v1678
    %v1747 = vunpack.c.l.b16 %v1679
    %v1748 = vunpack.c.l.b16 %v1680
    %v1749 = vunpack.c.l.b16 %v1681
    %v1750 = vunpack.c.l.b16 %v1682
    %v1751 = vunpack.c.l.b16 %v1683
    %v1752 = vunpack.c.l.b16 %v1684
    %v1753 = vunpack.c.l.b16 %v1685
    %v1754 = vunpack.c.l.b16 %v1686
    %v1755 = vpack.c.b16 %v1724, %v1723
    %v1756 = vpack.c.b16 %v1726, %v1725
    %v1757 = vpack.c.b16 %v1728, %v1727
    %v1758 = vpack.c.b16 %v1730, %v1729
    %v1759 = vpack.c.b16 %v1732, %v1731
    %v1760 = vpack.c.b16 %v1734, %v1733
    %v1761 = vpack.c.b16 %v1736, %v1735
    %v1762 = vpack.c.b16 %v1738, %v1737
    %v1763 = vpack.c.b16 %v1740, %v1739
    %v1764 = vpack.c.b16 %v1742, %v1741
    %v1765 = vpack.c.b16 %v1744, %v1743
    %v1766 = vpack.c.b16 %v1746, %v1745
    %v1767 = vpack.c.b16 %v1748, %v1747
    %v1768 = vpack.c.b16 %v1750, %v1749
    %v1769 = vpack.c.b16 %v1752, %v1751
    %v1770 = vpack.c.b16 %v1754, %v1753
    %1787 = vmatpush.bf16.msra.mxu0 %v1762
    %1788 = vmatpush.bf16.msra.mxu0 %v1761
    %1789 = vmatpush.bf16.msra.mxu0 %v1760
    %1790 = vmatpush.bf16.msra.mxu0 %v1759
    %1791 = vmatpush.bf16.msra.mxu0 %v1758
    %1792 = vmatpush.bf16.msra.mxu0 %v1757
    %1793 = vmatpush.bf16.msra.mxu0 %v1756
    %1794 = vmatpush.bf16.msra.mxu0 %v1755
    %1795 = vmatmul.bf16.gmra.mxu0 %v1653
    %v1796 = vpop.f32.mrf.mxu0
    %v1797 = vadd.f32 %v1689, %v1796
    %v1798 = vpop.f32.mrf.mxu0
    %1799 = vdwg.mxu0
    %1800 = vmatpush.bf16.msra.mxu0 %v1770
    %1801 = vmatpush.bf16.msra.mxu0 %v1769
    %1802 = vmatpush.bf16.msra.mxu0 %v1768
    %1803 = vmatpush.bf16.msra.mxu0 %v1767
    %1804 = vmatpush.bf16.msra.mxu0 %v1766
    %1805 = vmatpush.bf16.msra.mxu0 %v1765
    %1806 = vmatpush.bf16.msra.mxu0 %v1764
    %1807 = vmatpush.bf16.msra.mxu0 %v1763
    %1808 = vmatmul.bf16.gmra.mxu0 %v1654
    %v1809 = vpop.f32.mrf.mxu0
    %v1810 = vadd.f32 %v1797, %v1809
    %v1811 = vpop.f32.mrf.mxu0
    %1812 = vdwg.mxu0
    %v1813 = vmax.f32 %v1810, 0.0
    %v1814 = vpack.c.bf16 %v1813, %v1813
    %v1815 = vld [vmem:[#allocation9] sm:$0xf]
    %v1816 = vld [vmem:[#allocation9 + $0x4] sm:$0xf]
    %v1817 = vld [vmem:[#allocation9 + $0x8] sm:$0xf]
    %v1818 = vld [vmem:[#allocation9 + $0xc] sm:$0xf]
    %v1819 = vld [vmem:[#allocation9 + $0x10] sm:$0xf]
    %v1820 = vld [vmem:[#allocation9 + $0x14] sm:$0xf]
    %v1821 = vld [vmem:[#allocation9 + $0x18] sm:$0xf]
    %v1822 = vld [vmem:[#allocation9 + $0x1c] sm:$0xf]
    %v1823 = vld [vmem:[#allocation9 + $0x20] sm:$0xf]
    %v1824 = vld [vmem:[#allocation9 + $0x24] sm:$0xf]
    %v1825 = vld [vmem:[#allocation9 + $0x28] sm:$0xf]
    %v1826 = vld [vmem:[#allocation9 + $0x2c] sm:$0xf]
    %v1827 = vld [vmem:[#allocation9 + $0x30] sm:$0xf]
    %v1828 = vld [vmem:[#allocation9 + $0x34] sm:$0xf]
    %v1829 = vld [vmem:[#allocation9 + $0x38] sm:$0xf]
    %v1830 = vld [vmem:[#allocation9 + $0x3c] sm:$0xf]
    %v1831 = vld [vmem:[%s6] sm:$0x1]
    %v1833 = vperm.slane %v1831, 0
    %v1851 = vunpack.c.l.b16 %v1815
    %v1852 = vunpack.c.l.b16 %v1816
    %v1853 = vunpack.c.l.b16 %v1817
    %v1854 = vunpack.c.l.b16 %v1818
    %v1855 = vunpack.c.l.b16 %v1819
    %v1856 = vunpack.c.l.b16 %v1820
    %v1857 = vunpack.c.l.b16 %v1821
    %v1858 = vunpack.c.l.b16 %v1822
    %v1859 = vunpack.c.l.b16 %v1823
    %v1860 = vunpack.c.l.b16 %v1824
    %v1861 = vunpack.c.l.b16 %v1825
    %v1862 = vunpack.c.l.b16 %v1826
    %v1863 = vunpack.c.l.b16 %v1827
    %v1864 = vunpack.c.l.b16 %v1828
    %v1865 = vunpack.c.l.b16 %v1829
    %v1866 = vunpack.c.l.b16 %v1830
    %v1867 = vpack.c.b16 %v1852, %v1851
    %v1868 = vpack.c.b16 %v1854, %v1853
    %v1869 = vpack.c.b16 %v1856, %v1855
    %v1870 = vpack.c.b16 %v1858, %v1857
    %v1871 = vpack.c.b16 %v1860, %v1859
    %v1872 = vpack.c.b16 %v1862, %v1861
    %v1873 = vpack.c.b16 %v1864, %v1863
    %v1874 = vpack.c.b16 %v1866, %v1865
    %1883 = vmatpush.bf16.msra.mxu0 %v1874
    %1884 = vmatpush.bf16.msra.mxu0 %v1873
    %1885 = vmatpush.bf16.msra.mxu0 %v1872
    %1886 = vmatpush.bf16.msra.mxu0 %v1871
    %1887 = vmatpush.bf16.msra.mxu0 %v1870
    %1888 = vmatpush.bf16.msra.mxu0 %v1869
    %1889 = vmatpush.bf16.msra.mxu0 %v1868
    %1890 = vmatpush.bf16.msra.mxu0 %v1867
    %1891 = vmatmul.bf16.gmra.mxu0 %v1814
    %v1892 = vpop.f32.mrf.mxu0
    %v1893 = vadd.f32 %v1833, %v1892
    %v1894 = vpop.f32.mrf.mxu0
    %1895 = vdwg.mxu0
    %v1896 = vpack.c.bf16 %v1893, %v1893
    %v1898 = vrot.slane %v1896, 2
    %vm1899 = vcmask 1041408
    %v1902 = vsel %vm1899, %v1896, %v1898
    %vm1903 = vcmask 1043458
    %v1904 = vsel %vm1903, %v1896, %v1898
    %v1906 = vrot.slane %v1904, 2
    %1909 = vst [vmem:[#allocation10] sm:$0x3] %v1902
    %1910 = vst [vmem:[#allocation10 + $0x2] sm:$0x3] %v1906
    // Predicated region
    $region50: #{mlp_head_efficientnet_b3.1} parent=1 // pred_check
      _
    $region51: #{mlp_head_efficientnet_b3.1} parent=1 // pred_check_branch
      %1912 = sbr.rel (0) target = $region53
    $region52: #{mlp_head_efficientnet_b3.1} parent=1 // pred_region
      // Predicated region
      $region54: #{mlp_head_efficientnet_b3.1} parent=52 // pred_check
        _
      $region55: #{mlp_head_efficientnet_b3.1} parent=52 // pred_check_branch
        %1914 = sbr.rel (0) target = $region57
      $region56: #{mlp_head_efficientnet_b3.1} parent=52 // pred_region
        // Predicated region
        $region58: #{mlp_head_efficientnet_b3.1} parent=56 // pred_check
          _
        $region59: #{mlp_head_efficientnet_b3.1} parent=56 // pred_check_branch
          %1916 = sbr.rel target = $region61
        $region60: #{mlp_head_efficientnet_b3.1} parent=56 // pred_region
          // Predicated region
          $region73: #{mlp_head_efficientnet_b3.1} parent=60 // pred_check
            _
          $region74: #{mlp_head_efficientnet_b3.1} parent=60 // pred_check_branch
            %1932 = sbr.rel (0) target = $region76
          $region75: #{mlp_head_efficientnet_b3.1} parent=60 // pred_region
            %s1934 = ssub.s32 4, 1
            loop: start=0, step=1, limit=1
            $region77: #{mlp_head_efficientnet_b3.1} parent=75 // loop_pre_header
              _
            $region78: #{mlp_head_efficientnet_b3.1} parent=75 // loop_header
              %s1936 = sphi 0, %s1940
              %p1937 = scmp.ge.s32.totalorder %s1936, 1
              %s1941 = sphi [#allocation10], [#allocation10]
              %s1942 = sphi %s7, %s7
            $region79: #{mlp_head_efficientnet_b3.1} parent=75 // loop_header_branch
              %1939 = sbr.rel (%p1937) target = $region83
            $region80: #{mlp_head_efficientnet_b3.1} parent=75 // loop_body
              %v1943 = vld [vmem:[%s1941] sm:%s1934]
              %1944 = vst [vmem:[%s1942] sm:%s1934] %v1943
            $region81: #{mlp_head_efficientnet_b3.1} parent=75 // loop_footer
              %s1940 = sadd.s32 1, %s1936
            $region82: #{mlp_head_efficientnet_b3.1} parent=75 // loop_footer_branch
              %1935 = sbr.rel target = $region78
            $region83: #{mlp_head_efficientnet_b3.1} parent=75 // loop_exit
              _
          $region76: #{mlp_head_efficientnet_b3.1} parent=60 // pred_fallthru
            _
        $region61: #{mlp_head_efficientnet_b3.1} parent=56 // pred_fallthru
          _
        // Predicated region
        $region62: #{mlp_head_efficientnet_b3.1} parent=56 // pred_check
          _
        $region63: #{mlp_head_efficientnet_b3.1} parent=56 // pred_check_branch
          %1918 = sbr.rel (0) target = $region65
        $region64: #{mlp_head_efficientnet_b3.1} parent=56 // pred_region
          %s1920 = ssub.s32 4, 1
          loop: start=0, step=1, limit=1
          $region66: #{mlp_head_efficientnet_b3.1} parent=64 // loop_pre_header
            _
          $region67: #{mlp_head_efficientnet_b3.1} parent=64 // loop_header
            %s1922 = sphi 0, %s1926
            %p1923 = scmp.ge.s32.totalorder %s1922, 1
            %s1927 = sphi [#allocation10], [#allocation10]
            %s1928 = sphi %s7, %s7
          $region68: #{mlp_head_efficientnet_b3.1} parent=64 // loop_header_branch
            %1925 = sbr.rel (%p1923) target = $region72
          $region69: #{mlp_head_efficientnet_b3.1} parent=64 // loop_body
            %v1929 = vld [vmem:[%s1927] sm:%s1920]
            %1930 = vst [vmem:[%s1928] sm:%s1920] %v1929
          $region70: #{mlp_head_efficientnet_b3.1} parent=64 // loop_footer
            %s1926 = sadd.s32 1, %s1922
          $region71: #{mlp_head_efficientnet_b3.1} parent=64 // loop_footer_branch
            %1921 = sbr.rel target = $region67
          $region72: #{mlp_head_efficientnet_b3.1} parent=64 // loop_exit
            _
        $region65: #{mlp_head_efficientnet_b3.1} parent=56 // pred_fallthru
          _
      $region57: #{mlp_head_efficientnet_b3.1} parent=52 // pred_fallthru
        _
      %1945 = vnop
    $region53: #{mlp_head_efficientnet_b3.1} parent=1 // pred_fallthru
      _
    // Predicated region
    $region84: #{mlp_head_efficientnet_b3.1} parent=1 // pred_check
      _
    $region85: #{mlp_head_efficientnet_b3.1} parent=1 // pred_check_branch
      %1947 = sbr.rel (0) target = $region87
    $region86: #{mlp_head_efficientnet_b3.1} parent=1 // pred_region
      _
    $region87: #{mlp_head_efficientnet_b3.1} parent=1 // pred_fallthru
      _
    %1948 = vsyncpa [#allocation3], 1
    %1949 = vsyncpa [#allocation5], 1
    %1950 = vsyncpa [#allocation8], 1

</llo_original>
